<compile_context>
chip_gen: v5e
topology: v5e:2x2
jax: 0.10.0
libtpu: 0.0.40
codegen_flags: <defaults>
</compile_context>

<pallas_src>
import functools

import jax
import jax.numpy as jnp
import numpy as np
from jax import lax
from jax.experimental import pallas as pl
from jax.experimental.pallas import tpu as pltpu


# ----------------------------------------------------------------------------
# Fused kernel: conv1+ReLU+pool+BN1 -> conv2+ReLU+pool -> fc1(+BN2 folded)+ReLU
#               -> (Dropout = eval identity) -> fc2.  One program per batch block.
# ----------------------------------------------------------------------------
def _kcnn_kernel(H, W, C1, C2,
                 x_ref, a1_ref, b1_ref, sc1_ref, sh1_ref,
                 a2_ref, b2_ref, wf1_ref, bf1_ref, wf2_ref, bf2_ref,
                 out_ref):
    f32, bf16 = jnp.float32, jnp.bfloat16
    Bblk = out_ref.shape[0]
    H4 = H // 4
    WC1 = W * C1
    HB = H4 * Bblk                 # rows per h2-parity group of the pool1 output
    PB = 2 * HB                    # total pool1 rows in this block

    def wpool(y, c):
        # 2x1 max-pool along W on the (w*c + ch) lane layout: chunk k <- max(k, k+1).
        # Valid pooled values land in the even chunks; odd chunks hold finite
        # garbage that downstream band / fc matrices zero-weight exactly.
        shifted = jnp.concatenate([y[:, c:], y[:, :c]], axis=-1)   # stays lane-dense
        return jnp.maximum(y, shifted)

    # ---- conv1 + bias + ReLU fused with its 2x2 max-pool --------------------
    # x_ref: (2, H4, Bblk, 4*W).  Leading dim = pooled-row parity, so conv1 output
    # rows come out ordered (h2 parity, h4, batch).  Both pool parities (even/odd
    # conv rows) share ONE K = 4*W LHS; H-pool is the max of the two matmuls.
    X = x_ref[...].reshape(PB, 4 * W).astype(bf16)
    c1 = jnp.maximum(jnp.dot(X, a1_ref[0], preferred_element_type=f32),
                     jnp.dot(X, a1_ref[1], preferred_element_type=f32))
    c1 = jnp.maximum(c1 + b1_ref[...], 0.0)                       # (PB, W*C1)
    bn1 = wpool(c1, C1) * sc1_ref[...] + sh1_ref[...]             # BatchNorm1 (eval)

    # ---- conv2 + bias + ReLU fused with its 2x2 max-pool --------------------
    # Zero-padded rows of the pool1 map are built as value concats (no scratch):
    # bn1[:HB] holds even-h2 rows (h2 = 2*h4), bn1[HB:] odd-h2 rows (h2 = 2*h4+1).
    # Y{s}[h4 block] is padded row 2*h4 + s  (padded row p <-> pool1 row p-1).
    zero_blk = jnp.zeros((Bblk, WC1), f32)
    if H4 > 1:
        Y0 = jnp.concatenate([zero_blk, bn1[HB:HB + (H4 - 1) * Bblk]], axis=0)
        Y3 = jnp.concatenate([bn1[Bblk:HB], zero_blk], axis=0)
    else:
        Y0, Y3 = zero_blk, zero_blk
    Y1, Y2 = bn1[:HB], bn1[HB:]
    Yb = [y.astype(bf16) for y in (Y0, Y1, Y2, Y3)]

    def band3(y0, y1, y2):
        acc = jnp.dot(y0, a2_ref[0], preferred_element_type=f32)
        acc += jnp.dot(y1, a2_ref[1], preferred_element_type=f32)
        acc += jnp.dot(y2, a2_ref[2], preferred_element_type=f32)
        return acc

    c2 = jnp.maximum(band3(Yb[0], Yb[1], Yb[2]),                  # even conv2 rows
                     band3(Yb[1], Yb[2], Yb[3]))                  # odd conv2 rows
    c2 = jnp.maximum(c2 + b2_ref[...], 0.0)                       # (HB, W2*C2)
    pw2 = wpool(c2, C2)

    # ---- classifier: fc1 (BatchNorm2 folded) + ReLU + fc2 -------------------
    # pw2 rows are ordered (h4, batch) -> fc1 consumes static contiguous slices.
    # TODO(synk): nn.Dropout(0.5) is the inference-mode identity (no PRNG masking).
    acc = jnp.dot(pw2[:Bblk].astype(bf16), wf1_ref[0], preferred_element_type=f32)
    for h4 in range(1, H4):
        acc += jnp.dot(pw2[h4 * Bblk:(h4 + 1) * Bblk].astype(bf16), wf1_ref[h4],
                       preferred_element_type=f32)
    hfc = jnp.maximum(acc + bf1_ref[...], 0.0)
    out_ref[...] = (jnp.dot(hfc.astype(bf16), wf2_ref[...],
                            preferred_element_type=f32) + bf2_ref[...])


# ----------------------------------------------------------------------------
# One-time weight preparation (all re-layouts / BN folding hoisted out of forward).
# ----------------------------------------------------------------------------
def prepare_params(params, n_mels, time_bins, eps=1e-5):
    H, W = int(n_mels), int(time_bins)
    assert H % 4 == 0 and W % 4 == 0, "n_mels/time_bins must be divisible by 4"
    f32 = np.float32

    w1 = np.asarray(params['conv1_w'], f32)          # (C1, 1, 3, 3)
    b1 = np.asarray(params['conv1_b'], f32)
    w2 = np.asarray(params['conv2_w'], f32)          # (C2, C1, 3, 3)
    b2 = np.asarray(params['conv2_b'], f32)
    f1w = np.asarray(params['fc1_w'], f32)           # (NF, C2*H4*W4)
    f1b = np.asarray(params['fc1_b'], f32)
    f2w = np.asarray(params['fc2_w'], f32)           # (NC, NF)
    f2b = np.asarray(params['fc2_b'], f32)

    C1, C2 = w1.shape[0], w2.shape[0]
    NF, NC = f1w.shape[0], f2w.shape[0]
    H2, W2, H4, W4 = H // 2, W // 2, H // 4, W // 4
    WC1, W2C2 = W * C1, W2 * C2
    NCP = ((max(NC, 128) + 127) // 128) * 128        # lane-dense logits width

    sc1 = np.asarray(params['bn1_gamma'], f32) / np.sqrt(np.asarray(params['bn1_var'], f32) + eps)
    sh1 = np.asarray(params['bn1_beta'], f32) - np.asarray(params['bn1_mean'], f32) * sc1
    sc2 = np.asarray(params['bn2_gamma'], f32) / np.sqrt(np.asarray(params['bn2_var'], f32) + eps)
    sh2 = np.asarray(params['bn2_beta'], f32) - np.asarray(params['bn2_mean'], f32) * sc2

    # conv1: two banded matrices (one per conv-row parity inside the 2x2 pool pair)
    # over a K = 4*W lane layout holding the 4 padded input rows of a pooled row.
    # The conv's W zero-padding is folded in as zero band entries.
    A1 = np.zeros((2, 4 * W, WC1), f32)
    for p in range(2):                # conv-row parity inside the pool pair
        for s in range(4):            # row inside the 4-row slab
            dh = s - p
            if not 0 <= dh <= 2:
                continue
            for w in range(W):
                for dw in range(3):
                    wi = w - 1 + dw
                    if 0 <= wi < W:
                        A1[p, s * W + wi, w * C1:(w + 1) * C1] = w1[:, 0, dh, dw]

    # conv2: 3 banded matrices (one per vertical tap) on the un-compacted pool1 lane
    # layout (K = W*C1 = lane-dense).  Odd w-chunks (W-pool garbage) and
    # out-of-range horizontal taps are exact zero rows (== PyTorch zero padding).
    A2 = np.zeros((3, WC1, W2C2), f32)
    for dh in range(3):
        for wpp in range(W2):         # conv2 output column
            for dw in range(3):
                wq = wpp + dw - 1     # pooled input column
                if 0 <= wq < W2:
                    A2[dh, 2 * wq * C1:(2 * wq + 1) * C1,
                       wpp * C2:(wpp + 1) * C2] = w2[:, :, dh, dw].T

    # fc1 with BatchNorm2 folded in, split per pooled row h4, PyTorch (c, h, w)
    # flatten order; zero rows at odd w2-chunks discard the W-pool garbage.
    f1w_r = f1w.reshape(NF, C2, H4, W4)
    Wf1 = np.zeros((H4, W2C2, NF), f32)
    for h4 in range(H4):
        for w4 in range(W4):
            for co in range(C2):
                Wf1[h4, 2 * w4 * C2 + co, :] = f1w_r[:, co, h4, w4] * sc2[co]
    bf1 = f1b + (f1w_r * sh2[None, :, None, None]).sum(axis=(1, 2, 3))

    # fc2 padded to a lane-dense output width.
    Wf2 = np.zeros((NF, NCP), f32)
    Wf2[:, :NC] = f2w.T
    bf2 = np.zeros((NCP,), f32)
    bf2[:NC] = f2b

    bf16 = jnp.bfloat16
    arrays = dict(
        a1=jnp.asarray(A1, bf16),
        b1=jnp.asarray(np.tile(b1, W)[None, :]),
        sc1=jnp.asarray(np.tile(sc1, W)[None, :]),
        sh1=jnp.asarray(np.tile(sh1, W)[None, :]),
        a2=jnp.asarray(A2, bf16),
        b2=jnp.asarray(np.tile(b2, W2)[None, :]),
        wf1=jnp.asarray(Wf1, bf16),
        bf1=jnp.asarray(bf1[None, :]),
        wf2=jnp.asarray(Wf2, bf16),
        bf2=jnp.asarray(bf2[None, :]),
    )
    meta = dict(H=H, W=W, C1=C1, C2=C2, NF=NF, num_classes=NC, NCP=NCP)
    return arrays, meta


def _round_up(x, m):
    return ((x + m - 1) // m) * m


# ----------------------------------------------------------------------------
# Forward wrapper: input layout plumbing + the single pallas_call + final slice.
# ----------------------------------------------------------------------------
def keystroke_cnn_forward(x_nchw, prep, *, H, W, C1, C2, NF, num_classes, NCP,
                          block_batch=128):
    B = x_nchw.shape[0]
    H4, W2 = H // 4, W // 2
    WC1, W2C2 = W * C1, W2 * C2

    # Batch blocking: Bblk samples per grid step (multiple of 8 for sublane tiling).
    # 128 is the v5e sweet spot; use block_batch=256 on v6e/v7x for large batches
    # (keeping >= 2 blocks so both v7x TensorCores get work via "parallel").
    Bblk = min(_round_up(block_batch, 8), _round_up(max(B, 1), 8))
    nblk = -(-B // Bblk)
    Bpad = nblk * Bblk

    # Input layout plumbing (cheap XLA gather on a tiny tensor): pad H with one zero
    # row top/bottom, pad the batch, then stack the 4 padded rows feeding each
    # pooled output row along lanes, split by pooled-row parity -> (2, H4, Bpad, 4W).
    xp = jnp.pad(x_nchw[:, 0].astype(jnp.float32), ((0, Bpad - B), (1, 1), (0, 0)))
    ridx = (4 * np.arange(H4)[None, :, None] + 2 * np.arange(2)[:, None, None]
            + np.arange(4)[None, None, :])                      # (2, H4, 4)
    x_slab = xp[:, ridx, :].transpose(1, 2, 0, 3, 4).reshape(2, H4, Bpad, 4 * W)

    kern = functools.partial(_kcnn_kernel, H, W, C1, C2)
    logits = pl.pallas_call(
        kern,
        out_shape=jax.ShapeDtypeStruct((Bpad, NCP), jnp.float32),
        grid=(nblk,),
        in_specs=[
            pl.BlockSpec((2, H4, Bblk, 4 * W), lambda b: (0, 0, b, 0)),  # input slabs
            pl.BlockSpec((2, 4 * W, WC1), lambda b: (0, 0, 0)),          # conv1 bands
            pl.BlockSpec((1, WC1), lambda b: (0, 0)),                    # conv1 bias
            pl.BlockSpec((1, WC1), lambda b: (0, 0)),                    # bn1 scale
            pl.BlockSpec((1, WC1), lambda b: (0, 0)),                    # bn1 shift
            pl.BlockSpec((3, WC1, W2C2), lambda b: (0, 0, 0)),           # conv2 bands
            pl.BlockSpec((1, W2C2), lambda b: (0, 0)),                   # conv2 bias
            pl.BlockSpec((H4, W2C2, NF), lambda b: (0, 0, 0)),           # fc1 (+BN2)
            pl.BlockSpec((1, NF), lambda b: (0, 0)),                     # fc1 bias
            pl.BlockSpec((NF, NCP), lambda b: (0, 0)),                   # fc2 (padded)
            pl.BlockSpec((1, NCP), lambda b: (0, 0)),                    # fc2 bias
        ],
        out_specs=pl.BlockSpec((Bblk, NCP), lambda b: (b, 0)),
        compiler_params=pltpu.CompilerParams(
            dimension_semantics=("parallel",),
            vmem_limit_bytes=48 * 1024 * 1024),
    )(x_slab, prep['a1'], prep['b1'], prep['sc1'], prep['sh1'],
      prep['a2'], prep['b2'], prep['wf1'], prep['bf1'], prep['wf2'], prep['bf2'])

    return logits[:B, :num_classes]


# ----------------------------------------------------------------------------
# Pure-JAX reference (mirrors the PyTorch module op-for-op, NCHW layout).
# ----------------------------------------------------------------------------
def ref_forward(x, p):
    eps = 1e-5

    def conv(x, w, b):
        y = lax.conv_general_dilated(x, w, (1, 1), 'SAME',
                                     dimension_numbers=('NCHW', 'OIHW', 'NCHW'),
                                     precision=lax.Precision.HIGHEST)
        return y + b[None, :, None, None]

    def pool(x):
        return lax.reduce_window(x, -jnp.inf, lax.max, (1, 1, 2, 2), (1, 1, 2, 2), 'VALID')

    def bn(x, g, bta, m, v):
        return ((x - m[None, :, None, None]) / jnp.sqrt(v[None, :, None, None] + eps)
                * g[None, :, None, None] + bta[None, :, None, None])

    y = bn(pool(jnp.maximum(conv(x, p['conv1_w'], p['conv1_b']), 0.0)),
           p['bn1_gamma'], p['bn1_beta'], p['bn1_mean'], p['bn1_var'])
    y = bn(pool(jnp.maximum(conv(y, p['conv2_w'], p['conv2_b']), 0.0)),
           p['bn2_gamma'], p['bn2_beta'], p['bn2_mean'], p['bn2_var'])
    flat = y.reshape(y.shape[0], -1)
    h = jnp.maximum(jnp.matmul(flat, p['fc1_w'].T, precision=lax.Precision.HIGHEST) + p['fc1_b'], 0.0)
    return jnp.matmul(h, p['fc2_w'].T, precision=lax.Precision.HIGHEST) + p['fc2_b']


if __name__ == "__main__":
    B, n_mels, time_bins, num_classes = 2, 16, 16, 8
    C1, C2 = 16, 32
    feat_dim = C2 * (n_mels // 4) * (time_bins // 4)   # = 512

    keys = jax.random.split(jax.random.PRNGKey(0), 17)
    params = {
        'conv1_w': 0.10 * jax.random.normal(keys[0], (C1, 1, 3, 3), jnp.float32),
        'conv1_b': 0.05 * jax.random.normal(keys[1], (C1,), jnp.float32),
        'bn1_gamma': jax.random.uniform(keys[2], (C1,), jnp.float32, 0.5, 1.5),
        'bn1_beta': 0.10 * jax.random.normal(keys[3], (C1,), jnp.float32),
        'bn1_mean': 0.10 * jax.random.normal(keys[4], (C1,), jnp.float32),
        'bn1_var': jax.random.uniform(keys[5], (C1,), jnp.float32, 0.5, 1.5),
        'conv2_w': 0.05 * jax.random.normal(keys[6], (C2, C1, 3, 3), jnp.float32),
        'conv2_b': 0.05 * jax.random.normal(keys[7], (C2,), jnp.float32),
        'bn2_gamma': jax.random.uniform(keys[8], (C2,), jnp.float32, 0.5, 1.5),
        'bn2_beta': 0.10 * jax.random.normal(keys[9], (C2,), jnp.float32),
        'bn2_mean': 0.10 * jax.random.normal(keys[10], (C2,), jnp.float32),
        'bn2_var': jax.random.uniform(keys[11], (C2,), jnp.float32, 0.5, 1.5),
        'fc1_w': 0.05 * jax.random.normal(keys[12], (128, feat_dim), jnp.float32),
        'fc1_b': 0.05 * jax.random.normal(keys[13], (128,), jnp.float32),
        'fc2_w': 0.05 * jax.random.normal(keys[14], (num_classes, 128), jnp.float32),
        'fc2_b': 0.05 * jax.random.normal(keys[15], (num_classes,), jnp.float32),
    }
    x = jax.random.normal(keys[16], (B, 1, n_mels, time_bins), jnp.float32)

    prep, meta = prepare_params(params, n_mels, time_bins)      # one-time re-layout
    fwd = jax.jit(functools.partial(keystroke_cnn_forward, **meta))

    out = jax.block_until_ready(fwd(x, prep))
    ref = jax.block_until_ready(ref_forward(x, params))
    assert out.shape == (B, num_classes)
    # bf16 MXU operands (f32 accumulation) -> slightly looser tolerance than pure f32.
    np.testing.assert_allclose(np.asarray(out), np.asarray(ref), rtol=2e-2, atol=2e-2)
    print("KERNEL_OK")
</pallas_src>

<mosaic_0001>
module attributes {stable_mosaic.version = 11 : i64} {
  func.func @_kcnn_kernel(%arg0: i32, %arg1: memref<2x4x8x64xf32, #tpu.memory_space<vmem>>, %arg2: memref<2x64x256xbf16, #tpu.memory_space<vmem>>, %arg3: memref<1x256xf32, #tpu.memory_space<vmem>>, %arg4: memref<1x256xf32, #tpu.memory_space<vmem>>, %arg5: memref<1x256xf32, #tpu.memory_space<vmem>>, %arg6: memref<3x256x256xbf16, #tpu.memory_space<vmem>>, %arg7: memref<1x256xf32, #tpu.memory_space<vmem>>, %arg8: memref<4x256x128xbf16, #tpu.memory_space<vmem>>, %arg9: memref<1x128xf32, #tpu.memory_space<vmem>>, %arg10: memref<128x128xbf16, #tpu.memory_space<vmem>>, %arg11: memref<1x128xf32, #tpu.memory_space<vmem>>, %arg12: memref<8x128xf32, #tpu.memory_space<vmem>>) attributes {dimension_semantics = [#tpu.dimension_semantics<parallel>], iteration_bounds = array<i64: 1>, scalar_prefetch = 0 : i64, scratch_operands = 0 : i64, tpu.core_type = #tpu.core_type<tc>, window_params = [{transform_indices = @transform_0, window_bounds = array<i64: 2, 4, 8, 64>}, {pipeline_mode = #tpu.pipeline_mode<synchronous>, transform_indices = @transform_1, window_bounds = array<i64: 2, 64, 256>}, {pipeline_mode = #tpu.pipeline_mode<synchronous>, transform_indices = @transform_2, window_bounds = array<i64: 1, 256>}, {pipeline_mode = #tpu.pipeline_mode<synchronous>, transform_indices = @transform_3, window_bounds = array<i64: 1, 256>}, {pipeline_mode = #tpu.pipeline_mode<synchronous>, transform_indices = @transform_4, window_bounds = array<i64: 1, 256>}, {pipeline_mode = #tpu.pipeline_mode<synchronous>, transform_indices = @transform_5, window_bounds = array<i64: 3, 256, 256>}, {pipeline_mode = #tpu.pipeline_mode<synchronous>, transform_indices = @transform_6, window_bounds = array<i64: 1, 256>}, {pipeline_mode = #tpu.pipeline_mode<synchronous>, transform_indices = @transform_7, window_bounds = array<i64: 4, 256, 128>}, {pipeline_mode = #tpu.pipeline_mode<synchronous>, transform_indices = @transform_8, window_bounds = array<i64: 1, 128>}, {pipeline_mode = #tpu.pipeline_mode<synchronous>, transform_indices = @transform_9, window_bounds = array<i64: 128, 128>}, {pipeline_mode = #tpu.pipeline_mode<synchronous>, transform_indices = @transform_10, window_bounds = array<i64: 1, 128>}, {transform_indices = @transform_11, window_bounds = array<i64: 8, 128>}]} {
    %c0 = arith.constant 0 : index
    %c0_0 = arith.constant 0 : index
    %c0_1 = arith.constant 0 : index
    %c0_2 = arith.constant 0 : index
    %0 = vector.load %arg1[%c0, %c0_0, %c0_1, %c0_2] : memref<2x4x8x64xf32, #tpu.memory_space<vmem>>, vector<2x4x8x64xf32>
    %1 = vector.shape_cast %0 : vector<2x4x8x64xf32> to vector<64x64xf32>
    %2 = arith.truncf %1 : vector<64x64xf32> to vector<64x64xbf16>
    %c0_3 = arith.constant 0 : index
    %c0_4 = arith.constant 0 : index
    %c0_5 = arith.constant 0 : index
    %3 = vector.load %arg2[%c0_3, %c0_4, %c0_5] : memref<2x64x256xbf16, #tpu.memory_space<vmem>>, vector<1x64x256xbf16>
    %4 = vector.shape_cast %3 : vector<1x64x256xbf16> to vector<64x256xbf16>
    %cst = arith.constant dense<0.000000e+00> : vector<64x256xf32>
    %5 = tpu.matmul %2, %4, %cst {dimension_numbers = #tpu.dot_dimension_numbers<[1], [0], [0], [1], [0, 0, 1, 1], [], []>} : vector<64x64xbf16>, vector<64x256xbf16>, vector<64x256xf32> -> vector<64x256xf32>
    %c1 = arith.constant 1 : index
    %c0_6 = arith.constant 0 : index
    %c0_7 = arith.constant 0 : index
    %6 = vector.load %arg2[%c1, %c0_6, %c0_7] : memref<2x64x256xbf16, #tpu.memory_space<vmem>>, vector<1x64x256xbf16>
    %7 = vector.shape_cast %6 : vector<1x64x256xbf16> to vector<64x256xbf16>
    %cst_8 = arith.constant dense<0.000000e+00> : vector<64x256xf32>
    %8 = tpu.matmul %2, %7, %cst_8 {dimension_numbers = #tpu.dot_dimension_numbers<[1], [0], [0], [1], [0, 0, 1, 1], [], []>} : vector<64x64xbf16>, vector<64x256xbf16>, vector<64x256xf32> -> vector<64x256xf32>
    %9 = arith.maximumf %5, %8 : vector<64x256xf32>
    %c0_9 = arith.constant 0 : index
    %c0_10 = arith.constant 0 : index
    %10 = vector.load %arg3[%c0_9, %c0_10] : memref<1x256xf32, #tpu.memory_space<vmem>>, vector<1x256xf32>
    %11 = vector.broadcast %10 : vector<1x256xf32> to vector<64x256xf32>
    %12 = arith.addf %9, %11 : vector<64x256xf32>
    %cst_11 = arith.constant 0.000000e+00 : f32
    %13 = vector.broadcast %cst_11 : f32 to vector<64x256xf32>
    %14 = arith.maximumf %12, %13 : vector<64x256xf32>
    %15 = vector.extract_strided_slice %14 {offsets = [0, 16], sizes = [64, 240], strides = [1, 1]} : vector<64x256xf32> to vector<64x240xf32>
    %16 = vector.extract_strided_slice %14 {offsets = [0, 0], sizes = [64, 16], strides = [1, 1]} : vector<64x256xf32> to vector<64x16xf32>
    %17 = tpu.concatenate %15, %16 in 1 : vector<64x240xf32>, vector<64x16xf32> -> vector<64x256xf32>
    %18 = arith.maximumf %14, %17 : vector<64x256xf32>
    %c0_12 = arith.constant 0 : index
    %c0_13 = arith.constant 0 : index
    %19 = vector.load %arg4[%c0_12, %c0_13] : memref<1x256xf32, #tpu.memory_space<vmem>>, vector<1x256xf32>
    %20 = vector.broadcast %19 : vector<1x256xf32> to vector<64x256xf32>
    %21 = arith.mulf %18, %20 : vector<64x256xf32>
    %c0_14 = arith.constant 0 : index
    %c0_15 = arith.constant 0 : index
    %22 = vector.load %arg5[%c0_14, %c0_15] : memref<1x256xf32, #tpu.memory_space<vmem>>, vector<1x256xf32>
    %23 = vector.broadcast %22 : vector<1x256xf32> to vector<64x256xf32>
    %24 = arith.addf %21, %23 : vector<64x256xf32>
    %cst_16 = arith.constant 0.000000e+00 : f32
    %25 = vector.broadcast %cst_16 : f32 to vector<8x256xf32>
    %26 = vector.extract_strided_slice %24 {offsets = [32, 0], sizes = [24, 256], strides = [1, 1]} : vector<64x256xf32> to vector<24x256xf32>
    %27 = tpu.concatenate %25, %26 in 0 : vector<8x256xf32>, vector<24x256xf32> -> vector<32x256xf32>
    %28 = vector.extract_strided_slice %24 {offsets = [8, 0], sizes = [24, 256], strides = [1, 1]} : vector<64x256xf32> to vector<24x256xf32>
    %29 = tpu.concatenate %28, %25 in 0 : vector<24x256xf32>, vector<8x256xf32> -> vector<32x256xf32>
    %30 = vector.extract_strided_slice %24 {offsets = [0, 0], sizes = [32, 256], strides = [1, 1]} : vector<64x256xf32> to vector<32x256xf32>
    %31 = vector.extract_strided_slice %24 {offsets = [32, 0], sizes = [32, 256], strides = [1, 1]} : vector<64x256xf32> to vector<32x256xf32>
    %32 = arith.truncf %27 : vector<32x256xf32> to vector<32x256xbf16>
    %33 = arith.truncf %30 : vector<32x256xf32> to vector<32x256xbf16>
    %34 = arith.truncf %31 : vector<32x256xf32> to vector<32x256xbf16>
    %35 = arith.truncf %29 : vector<32x256xf32> to vector<32x256xbf16>
    %c0_17 = arith.constant 0 : index
    %c0_18 = arith.constant 0 : index
    %c0_19 = arith.constant 0 : index
    %36 = vector.load %arg6[%c0_17, %c0_18, %c0_19] : memref<3x256x256xbf16, #tpu.memory_space<vmem>>, vector<1x256x256xbf16>
    %37 = vector.shape_cast %36 : vector<1x256x256xbf16> to vector<256x256xbf16>
    %cst_20 = arith.constant dense<0.000000e+00> : vector<32x256xf32>
    %38 = tpu.matmul %32, %37, %cst_20 {dimension_numbers = #tpu.dot_dimension_numbers<[1], [0], [0], [1], [0, 0, 1, 1], [], []>} : vector<32x256xbf16>, vector<256x256xbf16>, vector<32x256xf32> -> vector<32x256xf32>
    %c1_21 = arith.constant 1 : index
    %c0_22 = arith.constant 0 : index
    %c0_23 = arith.constant 0 : index
    %39 = vector.load %arg6[%c1_21, %c0_22, %c0_23] : memref<3x256x256xbf16, #tpu.memory_space<vmem>>, vector<1x256x256xbf16>
    %40 = vector.shape_cast %39 : vector<1x256x256xbf16> to vector<256x256xbf16>
    %cst_24 = arith.constant dense<0.000000e+00> : vector<32x256xf32>
    %41 = tpu.matmul %33, %40, %cst_24 {dimension_numbers = #tpu.dot_dimension_numbers<[1], [0], [0], [1], [0, 0, 1, 1], [], []>} : vector<32x256xbf16>, vector<256x256xbf16>, vector<32x256xf32> -> vector<32x256xf32>
    %42 = arith.addf %38, %41 : vector<32x256xf32>
    %c2 = arith.constant 2 : index
    %c0_25 = arith.constant 0 : index
    %c0_26 = arith.constant 0 : index
    %43 = vector.load %arg6[%c2, %c0_25, %c0_26] : memref<3x256x256xbf16, #tpu.memory_space<vmem>>, vector<1x256x256xbf16>
    %44 = vector.shape_cast %43 : vector<1x256x256xbf16> to vector<256x256xbf16>
    %cst_27 = arith.constant dense<0.000000e+00> : vector<32x256xf32>
    %45 = tpu.matmul %34, %44, %cst_27 {dimension_numbers = #tpu.dot_dimension_numbers<[1], [0], [0], [1], [0, 0, 1, 1], [], []>} : vector<32x256xbf16>, vector<256x256xbf16>, vector<32x256xf32> -> vector<32x256xf32>
    %46 = arith.addf %42, %45 : vector<32x256xf32>
    %c0_28 = arith.constant 0 : index
    %c0_29 = arith.constant 0 : index
    %c0_30 = arith.constant 0 : index
    %47 = vector.load %arg6[%c0_28, %c0_29, %c0_30] : memref<3x256x256xbf16, #tpu.memory_space<vmem>>, vector<1x256x256xbf16>
    %48 = vector.shape_cast %47 : vector<1x256x256xbf16> to vector<256x256xbf16>
    %cst_31 = arith.constant dense<0.000000e+00> : vector<32x256xf32>
    %49 = tpu.matmul %33, %48, %cst_31 {dimension_numbers = #tpu.dot_dimension_numbers<[1], [0], [0], [1], [0, 0, 1, 1], [], []>} : vector<32x256xbf16>, vector<256x256xbf16>, vector<32x256xf32> -> vector<32x256xf32>
    %c1_32 = arith.constant 1 : index
    %c0_33 = arith.constant 0 : index
    %c0_34 = arith.constant 0 : index
    %50 = vector.load %arg6[%c1_32, %c0_33, %c0_34] : memref<3x256x256xbf16, #tpu.memory_space<vmem>>, vector<1x256x256xbf16>
    %51 = vector.shape_cast %50 : vector<1x256x256xbf16> to vector<256x256xbf16>
    %cst_35 = arith.constant dense<0.000000e+00> : vector<32x256xf32>
    %52 = tpu.matmul %34, %51, %cst_35 {dimension_numbers = #tpu.dot_dimension_numbers<[1], [0], [0], [1], [0, 0, 1, 1], [], []>} : vector<32x256xbf16>, vector<256x256xbf16>, vector<32x256xf32> -> vector<32x256xf32>
    %53 = arith.addf %49, %52 : vector<32x256xf32>
    %c2_36 = arith.constant 2 : index
    %c0_37 = arith.constant 0 : index
    %c0_38 = arith.constant 0 : index
    %54 = vector.load %arg6[%c2_36, %c0_37, %c0_38] : memref<3x256x256xbf16, #tpu.memory_space<vmem>>, vector<1x256x256xbf16>
    %55 = vector.shape_cast %54 : vector<1x256x256xbf16> to vector<256x256xbf16>
    %cst_39 = arith.constant dense<0.000000e+00> : vector<32x256xf32>
    %56 = tpu.matmul %35, %55, %cst_39 {dimension_numbers = #tpu.dot_dimension_numbers<[1], [0], [0], [1], [0, 0, 1, 1], [], []>} : vector<32x256xbf16>, vector<256x256xbf16>, vector<32x256xf32> -> vector<32x256xf32>
    %57 = arith.addf %53, %56 : vector<32x256xf32>
    %58 = arith.maximumf %46, %57 : vector<32x256xf32>
    %c0_40 = arith.constant 0 : index
    %c0_41 = arith.constant 0 : index
    %59 = vector.load %arg7[%c0_40, %c0_41] : memref<1x256xf32, #tpu.memory_space<vmem>>, vector<1x256xf32>
    %60 = vector.broadcast %59 : vector<1x256xf32> to vector<32x256xf32>
    %61 = arith.addf %58, %60 : vector<32x256xf32>
    %cst_42 = arith.constant 0.000000e+00 : f32
    %62 = vector.broadcast %cst_42 : f32 to vector<32x256xf32>
    %63 = arith.maximumf %61, %62 : vector<32x256xf32>
    %64 = vector.extract_strided_slice %63 {offsets = [0, 32], sizes = [32, 224], strides = [1, 1]} : vector<32x256xf32> to vector<32x224xf32>
    %65 = vector.extract_strided_slice %63 {offsets = [0, 0], sizes = [32, 32], strides = [1, 1]} : vector<32x256xf32> to vector<32x32xf32>
    %66 = tpu.concatenate %64, %65 in 1 : vector<32x224xf32>, vector<32x32xf32> -> vector<32x256xf32>
    %67 = arith.maximumf %63, %66 : vector<32x256xf32>
    %68 = vector.extract_strided_slice %67 {offsets = [0, 0], sizes = [8, 256], strides = [1, 1]} : vector<32x256xf32> to vector<8x256xf32>
    %69 = arith.truncf %68 : vector<8x256xf32> to vector<8x256xbf16>
    %c0_43 = arith.constant 0 : index
    %c0_44 = arith.constant 0 : index
    %c0_45 = arith.constant 0 : index
    %70 = vector.load %arg8[%c0_43, %c0_44, %c0_45] : memref<4x256x128xbf16, #tpu.memory_space<vmem>>, vector<1x256x128xbf16>
    %71 = vector.shape_cast %70 : vector<1x256x128xbf16> to vector<256x128xbf16>
    %cst_46 = arith.constant dense<0.000000e+00> : vector<8x128xf32>
    %72 = tpu.matmul %69, %71, %cst_46 {dimension_numbers = #tpu.dot_dimension_numbers<[1], [0], [0], [1], [0, 0, 1, 1], [], []>} : vector<8x256xbf16>, vector<256x128xbf16>, vector<8x128xf32> -> vector<8x128xf32>
    %73 = vector.extract_strided_slice %67 {offsets = [8, 0], sizes = [8, 256], strides = [1, 1]} : vector<32x256xf32> to vector<8x256xf32>
    %74 = arith.truncf %73 : vector<8x256xf32> to vector<8x256xbf16>
    %c1_47 = arith.constant 1 : index
    %c0_48 = arith.constant 0 : index
    %c0_49 = arith.constant 0 : index
    %75 = vector.load %arg8[%c1_47, %c0_48, %c0_49] : memref<4x256x128xbf16, #tpu.memory_space<vmem>>, vector<1x256x128xbf16>
    %76 = vector.shape_cast %75 : vector<1x256x128xbf16> to vector<256x128xbf16>
    %cst_50 = arith.constant dense<0.000000e+00> : vector<8x128xf32>
    %77 = tpu.matmul %74, %76, %cst_50 {dimension_numbers = #tpu.dot_dimension_numbers<[1], [0], [0], [1], [0, 0, 1, 1], [], []>} : vector<8x256xbf16>, vector<256x128xbf16>, vector<8x128xf32> -> vector<8x128xf32>
    %78 = arith.addf %72, %77 : vector<8x128xf32>
    %79 = vector.extract_strided_slice %67 {offsets = [16, 0], sizes = [8, 256], strides = [1, 1]} : vector<32x256xf32> to vector<8x256xf32>
    %80 = arith.truncf %79 : vector<8x256xf32> to vector<8x256xbf16>
    %c2_51 = arith.constant 2 : index
    %c0_52 = arith.constant 0 : index
    %c0_53 = arith.constant 0 : index
    %81 = vector.load %arg8[%c2_51, %c0_52, %c0_53] : memref<4x256x128xbf16, #tpu.memory_space<vmem>>, vector<1x256x128xbf16>
    %82 = vector.shape_cast %81 : vector<1x256x128xbf16> to vector<256x128xbf16>
    %cst_54 = arith.constant dense<0.000000e+00> : vector<8x128xf32>
    %83 = tpu.matmul %80, %82, %cst_54 {dimension_numbers = #tpu.dot_dimension_numbers<[1], [0], [0], [1], [0, 0, 1, 1], [], []>} : vector<8x256xbf16>, vector<256x128xbf16>, vector<8x128xf32> -> vector<8x128xf32>
    %84 = arith.addf %78, %83 : vector<8x128xf32>
    %85 = vector.extract_strided_slice %67 {offsets = [24, 0], sizes = [8, 256], strides = [1, 1]} : vector<32x256xf32> to vector<8x256xf32>
    %86 = arith.truncf %85 : vector<8x256xf32> to vector<8x256xbf16>
    %c3 = arith.constant 3 : index
    %c0_55 = arith.constant 0 : index
    %c0_56 = arith.constant 0 : index
    %87 = vector.load %arg8[%c3, %c0_55, %c0_56] : memref<4x256x128xbf16, #tpu.memory_space<vmem>>, vector<1x256x128xbf16>
    %88 = vector.shape_cast %87 : vector<1x256x128xbf16> to vector<256x128xbf16>
    %cst_57 = arith.constant dense<0.000000e+00> : vector<8x128xf32>
    %89 = tpu.matmul %86, %88, %cst_57 {dimension_numbers = #tpu.dot_dimension_numbers<[1], [0], [0], [1], [0, 0, 1, 1], [], []>} : vector<8x256xbf16>, vector<256x128xbf16>, vector<8x128xf32> -> vector<8x128xf32>
    %90 = arith.addf %84, %89 : vector<8x128xf32>
    %c0_58 = arith.constant 0 : index
    %c0_59 = arith.constant 0 : index
    %91 = vector.load %arg9[%c0_58, %c0_59] : memref<1x128xf32, #tpu.memory_space<vmem>>, vector<1x128xf32>
    %92 = vector.broadcast %91 : vector<1x128xf32> to vector<8x128xf32>
    %93 = arith.addf %90, %92 : vector<8x128xf32>
    %cst_60 = arith.constant 0.000000e+00 : f32
    %94 = vector.broadcast %cst_60 : f32 to vector<8x128xf32>
    %95 = arith.maximumf %93, %94 : vector<8x128xf32>
    %96 = arith.truncf %95 : vector<8x128xf32> to vector<8x128xbf16>
    %c0_61 = arith.constant 0 : index
    %c0_62 = arith.constant 0 : index
    %97 = vector.load %arg10[%c0_61, %c0_62] : memref<128x128xbf16, #tpu.memory_space<vmem>>, vector<128x128xbf16>
    %cst_63 = arith.constant dense<0.000000e+00> : vector<8x128xf32>
    %98 = tpu.matmul %96, %97, %cst_63 {dimension_numbers = #tpu.dot_dimension_numbers<[1], [0], [0], [1], [0, 0, 1, 1], [], []>} : vector<8x128xbf16>, vector<128x128xbf16>, vector<8x128xf32> -> vector<8x128xf32>
    %c0_64 = arith.constant 0 : index
    %c0_65 = arith.constant 0 : index
    %99 = vector.load %arg11[%c0_64, %c0_65] : memref<1x128xf32, #tpu.memory_space<vmem>>, vector<1x128xf32>
    %100 = vector.broadcast %99 : vector<1x128xf32> to vector<8x128xf32>
    %101 = arith.addf %98, %100 : vector<8x128xf32>
    %c0_66 = arith.constant 0 : index
    %c0_67 = arith.constant 0 : index
    %102 = vector.load %arg12[%c0_66, %c0_67] : memref<8x128xf32, #tpu.memory_space<vmem>>, vector<8x128xf32>
    tpu.vector_store %arg12[%c0_66, %c0_67], %101 {strides = array<i32>} : memref<8x128xf32, #tpu.memory_space<vmem>>, vector<8x128xf32>,
    return
  }
  func.func @transform_0(%arg0: i32) -> (i32, i32, i32, i32) {
    %c0_i32 = arith.constant 0 : i32
    %c0_i32_0 = arith.constant 0 : i32
    %c0_i32_1 = arith.constant 0 : i32
    %c0_i32_2 = arith.constant 0 : i32
    return %c0_i32, %c0_i32_0, %arg0, %c0_i32_1 : i32, i32, i32, i32
  }
  func.func @transform_1(%arg0: i32) -> (i32, i32, i32) {
    %c0_i32 = arith.constant 0 : i32
    %c0_i32_0 = arith.constant 0 : i32
    %c0_i32_1 = arith.constant 0 : i32
    %c0_i32_2 = arith.constant 0 : i32
    return %c0_i32, %c0_i32_0, %c0_i32_1 : i32, i32, i32
  }
  func.func @transform_2(%arg0: i32) -> (i32, i32) {
    %c0_i32 = arith.constant 0 : i32
    %c0_i32_0 = arith.constant 0 : i32
    %c0_i32_1 = arith.constant 0 : i32
    return %c0_i32, %c0_i32_0 : i32, i32
  }
  func.func @transform_3(%arg0: i32) -> (i32, i32) {
    %c0_i32 = arith.constant 0 : i32
    %c0_i32_0 = arith.constant 0 : i32
    %c0_i32_1 = arith.constant 0 : i32
    return %c0_i32, %c0_i32_0 : i32, i32
  }
  func.func @transform_4(%arg0: i32) -> (i32, i32) {
    %c0_i32 = arith.constant 0 : i32
    %c0_i32_0 = arith.constant 0 : i32
    %c0_i32_1 = arith.constant 0 : i32
    return %c0_i32, %c0_i32_0 : i32, i32
  }
  func.func @transform_5(%arg0: i32) -> (i32, i32, i32) {
    %c0_i32 = arith.constant 0 : i32
    %c0_i32_0 = arith.constant 0 : i32
    %c0_i32_1 = arith.constant 0 : i32
    %c0_i32_2 = arith.constant 0 : i32
    return %c0_i32, %c0_i32_0, %c0_i32_1 : i32, i32, i32
  }
  func.func @transform_6(%arg0: i32) -> (i32, i32) {
    %c0_i32 = arith.constant 0 : i32
    %c0_i32_0 = arith.constant 0 : i32
    %c0_i32_1 = arith.constant 0 : i32
    return %c0_i32, %c0_i32_0 : i32, i32
  }
  func.func @transform_7(%arg0: i32) -> (i32, i32, i32) {
    %c0_i32 = arith.constant 0 : i32
    %c0_i32_0 = arith.constant 0 : i32
    %c0_i32_1 = arith.constant 0 : i32
    %c0_i32_2 = arith.constant 0 : i32
    return %c0_i32, %c0_i32_0, %c0_i32_1 : i32, i32, i32
  }
  func.func @transform_8(%arg0: i32) -> (i32, i32) {
    %c0_i32 = arith.constant 0 : i32
    %c0_i32_0 = arith.constant 0 : i32
    %c0_i32_1 = arith.constant 0 : i32
    return %c0_i32, %c0_i32_0 : i32, i32
  }
  func.func @transform_9(%arg0: i32) -> (i32, i32) {
    %c0_i32 = arith.constant 0 : i32
    %c0_i32_0 = arith.constant 0 : i32
    %c0_i32_1 = arith.constant 0 : i32
    return %c0_i32, %c0_i32_0 : i32, i32
  }
  func.func @transform_10(%arg0: i32) -> (i32, i32) {
    %c0_i32 = arith.constant 0 : i32
    %c0_i32_0 = arith.constant 0 : i32
    %c0_i32_1 = arith.constant 0 : i32
    return %c0_i32, %c0_i32_0 : i32, i32
  }
  func.func @transform_11(%arg0: i32) -> (i32, i32) {
    %c0_i32 = arith.constant 0 : i32
    %c0_i32_0 = arith.constant 0 : i32
    return %arg0, %c0_i32 : i32, i32
  }
}

</mosaic_0001>

<llo_original>
// kernel: keystroke_cnn_forward.1
$region0: #{keystroke_cnn_forward.1}
  #allocation0 [shape = 'u32[]', space=smem, size = 0x4, offset = 0x4, fixed_abs, tag = 'smem constant byte address 0x4 - core index']
  #allocation1 [shape = 'u32[72,128]{1,0:T(1,128)}', space=vmem, size = 0x9000, scoped, tag = 'internal scratch']
  %s0 = inlined_call_operand.vmem [shape: f32[2,4,8,64], index: 0, kind: input, shape index: {}]
  %s1 = inlined_call_operand.vmem [shape: bf16[2,64,256], index: 1, kind: input, shape index: {}]
  %s2 = inlined_call_operand.vmem [shape: f32[1,256], index: 2, kind: input, shape index: {}]
  %s3 = inlined_call_operand.vmem [shape: f32[1,256], index: 3, kind: input, shape index: {}]
  %s4 = inlined_call_operand.vmem [shape: f32[1,256], index: 4, kind: input, shape index: {}]
  %s5 = inlined_call_operand.vmem [shape: bf16[3,256,256], index: 5, kind: input, shape index: {}]
  %s6 = inlined_call_operand.vmem [shape: f32[1,256], index: 6, kind: input, shape index: {}]
  %s7 = inlined_call_operand.vmem [shape: bf16[4,256,128], index: 7, kind: input, shape index: {}]
  %s8 = inlined_call_operand.vmem [shape: f32[1,128], index: 8, kind: input, shape index: {}]
  %s9 = inlined_call_operand.vmem [shape: bf16[128,128], index: 9, kind: input, shape index: {}]
  %s10 = inlined_call_operand.vmem [shape: f32[1,128], index: 10, kind: input, shape index: {}]
  %s11 = inlined_call_operand.vmem [shape: f32[8,128], index: 11, kind: output, shape index: {}]
  %s12 = sld [smem:[#allocation0]]
  $region54: #{keystroke_cnn_forward.1} parent=0
    _
  %s14 = ssub.s32 1, %s12
  %s15 = scalar_select 0, %s14, %s12
  // Predicated region
  $region2: #{keystroke_cnn_forward.1} parent=0 // pred_check
    _
  $region3: #{keystroke_cnn_forward.1} parent=0 // pred_check_branch
    %17 = sbr.rel (0) target = $region5
  $region4: #{keystroke_cnn_forward.1} parent=0 // pred_region
    _
  $region5: #{keystroke_cnn_forward.1} parent=0 // pred_fallthru
    _
  // Predicated region
  $region6: #{keystroke_cnn_forward.1} parent=0 // pred_check
    _
  $region7: #{keystroke_cnn_forward.1} parent=0 // pred_check_branch
    %19 = sbr.rel (0) target = $region9
  $region8: #{keystroke_cnn_forward.1} parent=0 // pred_region
    _
  $region9: #{keystroke_cnn_forward.1} parent=0 // pred_fallthru
    _
  // Predicated region
  $region10: #{keystroke_cnn_forward.1} parent=0 // pred_check
    _
  $region11: #{keystroke_cnn_forward.1} parent=0 // pred_check_branch
    %21 = sbr.rel (0) target = $region13
  $region12: #{keystroke_cnn_forward.1} parent=0 // pred_region
    _
  $region13: #{keystroke_cnn_forward.1} parent=0 // pred_fallthru
    _
  // Predicated region
  $region14: #{keystroke_cnn_forward.1} parent=0 // pred_check
    _
  $region15: #{keystroke_cnn_forward.1} parent=0 // pred_check_branch
    %23 = sbr.rel (0) target = $region17
  $region16: #{keystroke_cnn_forward.1} parent=0 // pred_region
    _
  $region17: #{keystroke_cnn_forward.1} parent=0 // pred_fallthru
    _
  // Predicated region
  $region18: #{keystroke_cnn_forward.1} parent=0 // pred_check
    _
  $region19: #{keystroke_cnn_forward.1} parent=0 // pred_check_branch
    %25 = sbr.rel (0) target = $region21
  $region20: #{keystroke_cnn_forward.1} parent=0 // pred_region
    _
  $region21: #{keystroke_cnn_forward.1} parent=0 // pred_fallthru
    _
  // Predicated region
  $region22: #{keystroke_cnn_forward.1} parent=0 // pred_check
    _
  $region23: #{keystroke_cnn_forward.1} parent=0 // pred_check_branch
    %27 = sbr.rel (0) target = $region25
  $region24: #{keystroke_cnn_forward.1} parent=0 // pred_region
    _
  $region25: #{keystroke_cnn_forward.1} parent=0 // pred_fallthru
    _
  // Predicated region
  $region26: #{keystroke_cnn_forward.1} parent=0 // pred_check
    _
  $region27: #{keystroke_cnn_forward.1} parent=0 // pred_check_branch
    %29 = sbr.rel (0) target = $region29
  $region28: #{keystroke_cnn_forward.1} parent=0 // pred_region
    _
  $region29: #{keystroke_cnn_forward.1} parent=0 // pred_fallthru
    _
  // Predicated region
  $region30: #{keystroke_cnn_forward.1} parent=0 // pred_check
    _
  $region31: #{keystroke_cnn_forward.1} parent=0 // pred_check_branch
    %31 = sbr.rel (0) target = $region33
  $region32: #{keystroke_cnn_forward.1} parent=0 // pred_region
    _
  $region33: #{keystroke_cnn_forward.1} parent=0 // pred_fallthru
    _
  // Predicated region
  $region34: #{keystroke_cnn_forward.1} parent=0 // pred_check
    _
  $region35: #{keystroke_cnn_forward.1} parent=0 // pred_check_branch
    %33 = sbr.rel (0) target = $region37
  $region36: #{keystroke_cnn_forward.1} parent=0 // pred_region
    _
  $region37: #{keystroke_cnn_forward.1} parent=0 // pred_fallthru
    _
  // Predicated region
  $region38: #{keystroke_cnn_forward.1} parent=0 // pred_check
    _
  $region39: #{keystroke_cnn_forward.1} parent=0 // pred_check_branch
    %35 = sbr.rel (0) target = $region41
  $region40: #{keystroke_cnn_forward.1} parent=0 // pred_region
    _
  $region41: #{keystroke_cnn_forward.1} parent=0 // pred_fallthru
    _
  // Predicated region
  $region42: #{keystroke_cnn_forward.1} parent=0 // pred_check
    _
  $region43: #{keystroke_cnn_forward.1} parent=0 // pred_check_branch
    %37 = sbr.rel (0) target = $region45
  $region44: #{keystroke_cnn_forward.1} parent=0 // pred_region
    _
  $region45: #{keystroke_cnn_forward.1} parent=0 // pred_fallthru
    _
  %v39 = vld [vmem:[%s0] sm:$0xff]
  %v40 = vld [vmem:[%s0 + $0x8] sm:$0xff]
  %v41 = vld [vmem:[%s0 + $0x10] sm:$0xff]
  %v42 = vld [vmem:[%s0 + $0x18] sm:$0xff]
  %v43 = vld [vmem:[%s0 + $0x20] sm:$0xff]
  %v44 = vld [vmem:[%s0 + $0x28] sm:$0xff]
  %v45 = vld [vmem:[%s0 + $0x30] sm:$0xff]
  %v46 = vld [vmem:[%s0 + $0x38] sm:$0xff]
  %v47 = vpack.c.bf16 %v40, %v39
  %v48 = vpack.c.bf16 %v42, %v41
  %v49 = vpack.c.bf16 %v44, %v43
  %v50 = vpack.c.bf16 %v46, %v45
  %v51 = vld [vmem:[%s1] sm:$0xff]
  %v52 = vld [vmem:[%s1 + $0x8] sm:$0xff]
  %v53 = vld [vmem:[%s1 + $0x10] sm:$0xff]
  %v54 = vld [vmem:[%s1 + $0x18] sm:$0xff]
  %v55 = vld [vmem:[%s1 + $0x20] sm:$0xff]
  %v56 = vld [vmem:[%s1 + $0x28] sm:$0xff]
  %v57 = vld [vmem:[%s1 + $0x30] sm:$0xff]
  %v58 = vld [vmem:[%s1 + $0x38] sm:$0xff]
  %v67 = vunpack.c.l.b16 %v51
  %v68 = vunpack.c.h.b16 %v51
  %v69 = vunpack.c.l.b16 %v52
  %v70 = vunpack.c.h.b16 %v52
  %v71 = vunpack.c.l.b16 %v53
  %v72 = vunpack.c.h.b16 %v53
  %v73 = vunpack.c.l.b16 %v54
  %v74 = vunpack.c.h.b16 %v54
  %v75 = vunpack.c.l.b16 %v55
  %v76 = vunpack.c.h.b16 %v55
  %v77 = vunpack.c.l.b16 %v56
  %v78 = vunpack.c.h.b16 %v56
  %v79 = vunpack.c.l.b16 %v57
  %v80 = vunpack.c.h.b16 %v57
  %v81 = vunpack.c.l.b16 %v58
  %v82 = vunpack.c.h.b16 %v58
  %v83 = vpack.c.b16 %v69, %v67
  %v84 = vpack.c.b16 %v70, %v68
  %v85 = vpack.c.b16 %v73, %v71
  %v86 = vpack.c.b16 %v74, %v72
  %v87 = vpack.c.b16 %v77, %v75
  %v88 = vpack.c.b16 %v78, %v76
  %v89 = vpack.c.b16 %v81, %v79
  %v90 = vpack.c.b16 %v82, %v80
  %vm99 = vcmask 523264
  %v101 = vsel %vm99, %v47, 0
  %v104 = vsel %vm99, %v48, 0
  %v107 = vsel %vm99, %v49, 0
  %v110 = vsel %vm99, %v50, 0
  %112 = vmatpush.bf16.msra.mxu0 0
  %113 = vmatpush.bf16.msra.mxu0 0
  %114 = vmatpush.bf16.msra.mxu0 0
  %115 = vmatpush.bf16.msra.mxu0 0
  %116 = vmatpush.bf16.msra.mxu0 %v89
  %117 = vmatpush.bf16.msra.mxu0 %v87
  %118 = vmatpush.bf16.msra.mxu0 %v85
  %119 = vmatpush.bf16.msra.mxu0 %v83
  %120 = vmatmul.bf16.gmra.mxu0 %v101
  %v121 = vpop.f32.mrf.mxu0
  %v122 = vadd.f32 0.0, %v121
  %v123 = vpop.f32.mrf.mxu0
  %v124 = vadd.f32 0.0, %v123
  %125 = vmatmul.bf16.gmra.mxu0 %v104
  %v126 = vpop.f32.mrf.mxu0
  %v127 = vadd.f32 0.0, %v126
  %v128 = vpop.f32.mrf.mxu0
  %v129 = vadd.f32 0.0, %v128
  %130 = vmatmul.bf16.gmra.mxu0 %v107
  %v131 = vpop.f32.mrf.mxu0
  %v132 = vadd.f32 0.0, %v131
  %v133 = vpop.f32.mrf.mxu0
  %v134 = vadd.f32 0.0, %v133
  %135 = vmatmul.bf16.gmra.mxu0 %v110
  %v136 = vpop.f32.mrf.mxu0
  %v137 = vadd.f32 0.0, %v136
  %v138 = vpop.f32.mrf.mxu0
  %v139 = vadd.f32 0.0, %v138
  %140 = vdwg.mxu0
  %141 = vmatpush.bf16.msra.mxu0 0
  %142 = vmatpush.bf16.msra.mxu0 0
  %143 = vmatpush.bf16.msra.mxu0 0
  %144 = vmatpush.bf16.msra.mxu0 0
  %145 = vmatpush.bf16.msra.mxu0 %v90
  %146 = vmatpush.bf16.msra.mxu0 %v88
  %147 = vmatpush.bf16.msra.mxu0 %v86
  %148 = vmatpush.bf16.msra.mxu0 %v84
  %149 = vmatmul.bf16.gmra.mxu0 %v101
  %v150 = vpop.f32.mrf.mxu0
  %v151 = vadd.f32 0.0, %v150
  %v152 = vpop.f32.mrf.mxu0
  %v153 = vadd.f32 0.0, %v152
  %154 = vmatmul.bf16.gmra.mxu0 %v104
  %v155 = vpop.f32.mrf.mxu0
  %v156 = vadd.f32 0.0, %v155
  %v157 = vpop.f32.mrf.mxu0
  %v158 = vadd.f32 0.0, %v157
  %159 = vmatmul.bf16.gmra.mxu0 %v107
  %v160 = vpop.f32.mrf.mxu0
  %v161 = vadd.f32 0.0, %v160
  %v162 = vpop.f32.mrf.mxu0
  %v163 = vadd.f32 0.0, %v162
  %164 = vmatmul.bf16.gmra.mxu0 %v110
  %v165 = vpop.f32.mrf.mxu0
  %v166 = vadd.f32 0.0, %v165
  %v167 = vpop.f32.mrf.mxu0
  %v168 = vadd.f32 0.0, %v167
  %169 = vdwg.mxu0
  %s170 = scalar_lea.vmem %s1, 64
  %v171 = vld [vmem:[%s170] sm:$0xff]
  %v172 = vld [vmem:[%s170 + $0x8] sm:$0xff]
  %v173 = vld [vmem:[%s170 + $0x10] sm:$0xff]
  %v174 = vld [vmem:[%s170 + $0x18] sm:$0xff]
  %v175 = vld [vmem:[%s170 + $0x20] sm:$0xff]
  %v176 = vld [vmem:[%s170 + $0x28] sm:$0xff]
  %v177 = vld [vmem:[%s170 + $0x30] sm:$0xff]
  %v178 = vld [vmem:[%s170 + $0x38] sm:$0xff]
  %v187 = vunpack.c.l.b16 %v171
  %v188 = vunpack.c.h.b16 %v171
  %v189 = vunpack.c.l.b16 %v172
  %v190 = vunpack.c.h.b16 %v172
  %v191 = vunpack.c.l.b16 %v173
  %v192 = vunpack.c.h.b16 %v173
  %v193 = vunpack.c.l.b16 %v174
  %v194 = vunpack.c.h.b16 %v174
  %v195 = vunpack.c.l.b16 %v175
  %v196 = vunpack.c.h.b16 %v175
  %v197 = vunpack.c.l.b16 %v176
  %v198 = vunpack.c.h.b16 %v176
  %v199 = vunpack.c.l.b16 %v177
  %v200 = vunpack.c.h.b16 %v177
  %v201 = vunpack.c.l.b16 %v178
  %v202 = vunpack.c.h.b16 %v178
  %v203 = vpack.c.b16 %v189, %v187
  %v204 = vpack.c.b16 %v190, %v188
  %v205 = vpack.c.b16 %v193, %v191
  %v206 = vpack.c.b16 %v194, %v192
  %v207 = vpack.c.b16 %v197, %v195
  %v208 = vpack.c.b16 %v198, %v196
  %v209 = vpack.c.b16 %v201, %v199
  %v210 = vpack.c.b16 %v202, %v200
  %219 = vmatpush.bf16.msra.mxu0 0
  %220 = vmatpush.bf16.msra.mxu0 0
  %221 = vmatpush.bf16.msra.mxu0 0
  %222 = vmatpush.bf16.msra.mxu0 0
  %223 = vmatpush.bf16.msra.mxu0 %v209
  %224 = vmatpush.bf16.msra.mxu0 %v207
  %225 = vmatpush.bf16.msra.mxu0 %v205
  %226 = vmatpush.bf16.msra.mxu0 %v203
  %227 = vmatmul.bf16.gmra.mxu0 %v101
  %v228 = vpop.f32.mrf.mxu0
  %v229 = vadd.f32 0.0, %v228
  %v230 = vpop.f32.mrf.mxu0
  %v231 = vadd.f32 0.0, %v230
  %232 = vmatmul.bf16.gmra.mxu0 %v104
  %v233 = vpop.f32.mrf.mxu0
  %v234 = vadd.f32 0.0, %v233
  %v235 = vpop.f32.mrf.mxu0
  %v236 = vadd.f32 0.0, %v235
  %237 = vmatmul.bf16.gmra.mxu0 %v107
  %v238 = vpop.f32.mrf.mxu0
  %v239 = vadd.f32 0.0, %v238
  %v240 = vpop.f32.mrf.mxu0
  %v241 = vadd.f32 0.0, %v240
  %242 = vmatmul.bf16.gmra.mxu0 %v110
  %v243 = vpop.f32.mrf.mxu0
  %v244 = vadd.f32 0.0, %v243
  %v245 = vpop.f32.mrf.mxu0
  %v246 = vadd.f32 0.0, %v245
  %247 = vdwg.mxu0
  %248 = vmatpush.bf16.msra.mxu0 0
  %249 = vmatpush.bf16.msra.mxu0 0
  %250 = vmatpush.bf16.msra.mxu0 0
  %251 = vmatpush.bf16.msra.mxu0 0
  %252 = vmatpush.bf16.msra.mxu0 %v210
  %253 = vmatpush.bf16.msra.mxu0 %v208
  %254 = vmatpush.bf16.msra.mxu0 %v206
  %255 = vmatpush.bf16.msra.mxu0 %v204
  %256 = vmatmul.bf16.gmra.mxu0 %v101
  %v257 = vpop.f32.mrf.mxu0
  %v258 = vadd.f32 0.0, %v257
  %v259 = vpop.f32.mrf.mxu0
  %v260 = vadd.f32 0.0, %v259
  %261 = vmatmul.bf16.gmra.mxu0 %v104
  %v262 = vpop.f32.mrf.mxu0
  %v263 = vadd.f32 0.0, %v262
  %v264 = vpop.f32.mrf.mxu0
  %v265 = vadd.f32 0.0, %v264
  %266 = vmatmul.bf16.gmra.mxu0 %v107
  %v267 = vpop.f32.mrf.mxu0
  %v268 = vadd.f32 0.0, %v267
  %v269 = vpop.f32.mrf.mxu0
  %v270 = vadd.f32 0.0, %v269
  %271 = vmatmul.bf16.gmra.mxu0 %v110
  %v272 = vpop.f32.mrf.mxu0
  %v273 = vadd.f32 0.0, %v272
  %v274 = vpop.f32.mrf.mxu0
  %v275 = vadd.f32 0.0, %v274
  %276 = vdwg.mxu0
  %v277 = vmax.f32 %v122, %v229
  %v278 = vmax.f32 %v151, %v258
  %v279 = vmax.f32 %v124, %v231
  %v280 = vmax.f32 %v153, %v260
  %v281 = vmax.f32 %v127, %v234
  %v282 = vmax.f32 %v156, %v263
  %v283 = vmax.f32 %v129, %v236
  %v284 = vmax.f32 %v158, %v265
  %v285 = vmax.f32 %v132, %v239
  %v286 = vmax.f32 %v161, %v268
  %v287 = vmax.f32 %v134, %v241
  %v288 = vmax.f32 %v163, %v270
  %v289 = vmax.f32 %v137, %v244
  %v290 = vmax.f32 %v166, %v273
  %v291 = vmax.f32 %v139, %v246
  %v292 = vmax.f32 %v168, %v275
  %v293 = vld [vmem:[%s2] sm:$0x3]
  %v295 = vperm.slane %v293, 0
  %v296 = vperm.slane %v293, 1
  %v299 = vadd.f32 %v277, %v295
  %v300 = vadd.f32 %v278, %v296
  %v301 = vadd.f32 %v279, %v295
  %v302 = vadd.f32 %v280, %v296
  %v303 = vadd.f32 %v281, %v295
  %v304 = vadd.f32 %v282, %v296
  %v305 = vadd.f32 %v283, %v295
  %v306 = vadd.f32 %v284, %v296
  %v307 = vadd.f32 %v285, %v295
  %v308 = vadd.f32 %v286, %v296
  %v309 = vadd.f32 %v287, %v295
  %v310 = vadd.f32 %v288, %v296
  %v311 = vadd.f32 %v289, %v295
  %v312 = vadd.f32 %v290, %v296
  %v313 = vadd.f32 %v291, %v295
  %v314 = vadd.f32 %v292, %v296
  %v315 = vmax.f32 %v299, 0.0
  %v316 = vmax.f32 %v300, 0.0
  %v317 = vmax.f32 %v301, 0.0
  %v318 = vmax.f32 %v302, 0.0
  %v319 = vmax.f32 %v303, 0.0
  %v320 = vmax.f32 %v304, 0.0
  %v321 = vmax.f32 %v305, 0.0
  %v322 = vmax.f32 %v306, 0.0
  %v323 = vmax.f32 %v307, 0.0
  %v324 = vmax.f32 %v308, 0.0
  %v325 = vmax.f32 %v309, 0.0
  %v326 = vmax.f32 %v310, 0.0
  %v327 = vmax.f32 %v311, 0.0
  %v328 = vmax.f32 %v312, 0.0
  %v329 = vmax.f32 %v313, 0.0
  %v330 = vmax.f32 %v314, 0.0
  %347 = vrot.lane.b32.xlu0 %v315, 112
  %v348 = vpop.permute.xlu0 %347
  %349 = vrot.lane.b32.xlu0 %v316, 112
  %v350 = vpop.permute.xlu0 %349
  %351 = vrot.lane.b32.xlu0 %v317, 112
  %v352 = vpop.permute.xlu0 %351
  %353 = vrot.lane.b32.xlu0 %v318, 112
  %v354 = vpop.permute.xlu0 %353
  %355 = vrot.lane.b32.xlu0 %v319, 112
  %v356 = vpop.permute.xlu0 %355
  %357 = vrot.lane.b32.xlu0 %v320, 112
  %v358 = vpop.permute.xlu0 %357
  %359 = vrot.lane.b32.xlu0 %v321, 112
  %v360 = vpop.permute.xlu0 %359
  %361 = vrot.lane.b32.xlu0 %v322, 112
  %v362 = vpop.permute.xlu0 %361
  %363 = vrot.lane.b32.xlu0 %v323, 112
  %v364 = vpop.permute.xlu0 %363
  %365 = vrot.lane.b32.xlu0 %v324, 112
  %v366 = vpop.permute.xlu0 %365
  %367 = vrot.lane.b32.xlu0 %v325, 112
  %v368 = vpop.permute.xlu0 %367
  %369 = vrot.lane.b32.xlu0 %v326, 112
  %v370 = vpop.permute.xlu0 %369
  %371 = vrot.lane.b32.xlu0 %v327, 112
  %v372 = vpop.permute.xlu0 %371
  %373 = vrot.lane.b32.xlu0 %v328, 112
  %v374 = vpop.permute.xlu0 %373
  %375 = vrot.lane.b32.xlu0 %v329, 112
  %v376 = vpop.permute.xlu0 %375
  %377 = vrot.lane.b32.xlu0 %v330, 112
  %v378 = vpop.permute.xlu0 %377
  %vm379 = vcmask 916480
  %v380 = vsel %vm379, %v348, %v350
  %v381 = vsel %vm379, %v352, %v354
  %v382 = vsel %vm379, %v356, %v358
  %v383 = vsel %vm379, %v360, %v362
  %v384 = vsel %vm379, %v364, %v366
  %v385 = vsel %vm379, %v368, %v370
  %v386 = vsel %vm379, %v372, %v374
  %v387 = vsel %vm379, %v376, %v378
  %v412 = vsel %vm379, %v350, %v348
  %v413 = vsel %vm379, %v354, %v352
  %v414 = vsel %vm379, %v358, %v356
  %v415 = vsel %vm379, %v362, %v360
  %v416 = vsel %vm379, %v366, %v364
  %v417 = vsel %vm379, %v370, %v368
  %v418 = vsel %vm379, %v374, %v372
  %v419 = vsel %vm379, %v378, %v376
  %v420 = vmax.f32 %v315, %v380
  %v421 = vmax.f32 %v316, %v412
  %v422 = vmax.f32 %v317, %v381
  %v423 = vmax.f32 %v318, %v413
  %v424 = vmax.f32 %v319, %v382
  %v425 = vmax.f32 %v320, %v414
  %v426 = vmax.f32 %v321, %v383
  %v427 = vmax.f32 %v322, %v415
  %v428 = vmax.f32 %v323, %v384
  %v429 = vmax.f32 %v324, %v416
  %v430 = vmax.f32 %v325, %v385
  %v431 = vmax.f32 %v326, %v417
  %v432 = vmax.f32 %v327, %v386
  %v433 = vmax.f32 %v328, %v418
  %v434 = vmax.f32 %v329, %v387
  %v435 = vmax.f32 %v330, %v419
  %v436 = vld [vmem:[%s3] sm:$0x3]
  %v438 = vperm.slane %v436, 0
  %v439 = vperm.slane %v436, 1
  %v442 = vmul.f32 %v420, %v438
  %v443 = vmul.f32 %v421, %v439
  %v444 = vmul.f32 %v422, %v438
  %v445 = vmul.f32 %v423, %v439
  %v446 = vmul.f32 %v424, %v438
  %v447 = vmul.f32 %v425, %v439
  %v448 = vmul.f32 %v426, %v438
  %v449 = vmul.f32 %v427, %v439
  %v450 = vmul.f32 %v428, %v438
  %v451 = vmul.f32 %v429, %v439
  %v452 = vmul.f32 %v430, %v438
  %v453 = vmul.f32 %v431, %v439
  %v454 = vmul.f32 %v432, %v438
  %v455 = vmul.f32 %v433, %v439
  %v456 = vmul.f32 %v434, %v438
  %v457 = vmul.f32 %v435, %v439
  %v458 = vld [vmem:[%s4] sm:$0x3]
  %v460 = vperm.slane %v458, 0
  %v461 = vperm.slane %v458, 1
  %v464 = vadd.f32 %v442, %v460
  %v465 = vadd.f32 %v443, %v461
  %v466 = vadd.f32 %v444, %v460
  %v467 = vadd.f32 %v445, %v461
  %v468 = vadd.f32 %v446, %v460
  %v469 = vadd.f32 %v447, %v461
  %v470 = vadd.f32 %v448, %v460
  %v471 = vadd.f32 %v449, %v461
  %v472 = vadd.f32 %v450, %v460
  %v473 = vadd.f32 %v451, %v461
  %v474 = vadd.f32 %v452, %v460
  %v475 = vadd.f32 %v453, %v461
  %v476 = vadd.f32 %v454, %v460
  %v477 = vadd.f32 %v455, %v461
  %v478 = vadd.f32 %v456, %v460
  %v479 = vadd.f32 %v457, %v461
  %v480 = vpack.c.bf16 %v472, 0.0
  %v481 = vpack.c.bf16 %v473, 0.0
  %v482 = vpack.c.bf16 %v476, %v474
  %v483 = vpack.c.bf16 %v477, %v475
  %v484 = vpack.c.bf16 %v466, %v464
  %v485 = vpack.c.bf16 %v467, %v465
  %v486 = vpack.c.bf16 %v470, %v468
  %v487 = vpack.c.bf16 %v471, %v469
  %v488 = vpack.c.bf16 %v474, %v472
  %v489 = vpack.c.bf16 %v475, %v473
  %v490 = vpack.c.bf16 %v478, %v476
  %v491 = vpack.c.bf16 %v479, %v477
  %v492 = vpack.c.bf16 %v468, %v466
  %v493 = vpack.c.bf16 %v469, %v467
  %v494 = vpack.c.bf16 0.0, %v470
  %v495 = vpack.c.bf16 0.0, %v471
  %v496 = vld [vmem:[%s5] sm:$0xff]
  %v497 = vld [vmem:[%s5 + $0x8] sm:$0xff]
  %v498 = vld [vmem:[%s5 + $0x10] sm:$0xff]
  %v499 = vld [vmem:[%s5 + $0x18] sm:$0xff]
  %v500 = vld [vmem:[%s5 + $0x20] sm:$0xff]
  %v501 = vld [vmem:[%s5 + $0x28] sm:$0xff]
  %v502 = vld [vmem:[%s5 + $0x30] sm:$0xff]
  %v503 = vld [vmem:[%s5 + $0x38] sm:$0xff]
  %v504 = vld [vmem:[%s5 + $0x40] sm:$0xff]
  %v505 = vld [vmem:[%s5 + $0x48] sm:$0xff]
  %v506 = vld [vmem:[%s5 + $0x50] sm:$0xff]
  %v507 = vld [vmem:[%s5 + $0x58] sm:$0xff]
  %v508 = vld [vmem:[%s5 + $0x60] sm:$0xff]
  %v509 = vld [vmem:[%s5 + $0x68] sm:$0xff]
  %v510 = vld [vmem:[%s5 + $0x70] sm:$0xff]
  %v511 = vld [vmem:[%s5 + $0x78] sm:$0xff]
  %v512 = vld [vmem:[%s5 + $0x80] sm:$0xff]
  %v513 = vld [vmem:[%s5 + $0x88] sm:$0xff]
  %v514 = vld [vmem:[%s5 + $0x90] sm:$0xff]
  %v515 = vld [vmem:[%s5 + $0x98] sm:$0xff]
  %v516 = vld [vmem:[%s5 + $0xa0] sm:$0xff]
  %v517 = vld [vmem:[%s5 + $0xa8] sm:$0xff]
  %v518 = vld [vmem:[%s5 + $0xb0] sm:$0xff]
  %v519 = vld [vmem:[%s5 + $0xb8] sm:$0xff]
  %v520 = vld [vmem:[%s5 + $0xc0] sm:$0xff]
  %v521 = vld [vmem:[%s5 + $0xc8] sm:$0xff]
  %v522 = vld [vmem:[%s5 + $0xd0] sm:$0xff]
  %v523 = vld [vmem:[%s5 + $0xd8] sm:$0xff]
  %v524 = vld [vmem:[%s5 + $0xe0] sm:$0xff]
  %v525 = vld [vmem:[%s5 + $0xe8] sm:$0xff]
  %v526 = vld [vmem:[%s5 + $0xf0] sm:$0xff]
  %v527 = vld [vmem:[%s5 + $0xf8] sm:$0xff]
  %s528 = scalar_lea.vmem %s5, 256
  %v529 = vld [vmem:[%s528] sm:$0xff]
  %v530 = vld [vmem:[%s528 + $0x8] sm:$0xff]
  %v531 = vld [vmem:[%s528 + $0x10] sm:$0xff]
  %v532 = vld [vmem:[%s528 + $0x18] sm:$0xff]
  %v533 = vld [vmem:[%s528 + $0x20] sm:$0xff]
  %v534 = vld [vmem:[%s528 + $0x28] sm:$0xff]
  %v535 = vld [vmem:[%s528 + $0x30] sm:$0xff]
  %v536 = vld [vmem:[%s528 + $0x38] sm:$0xff]
  %v537 = vld [vmem:[%s528 + $0x40] sm:$0xff]
  %v538 = vld [vmem:[%s528 + $0x48] sm:$0xff]
  %v539 = vld [vmem:[%s528 + $0x50] sm:$0xff]
  %v540 = vld [vmem:[%s528 + $0x58] sm:$0xff]
  %v541 = vld [vmem:[%s528 + $0x60] sm:$0xff]
  %v542 = vld [vmem:[%s528 + $0x68] sm:$0xff]
  %v543 = vld [vmem:[%s528 + $0x70] sm:$0xff]
  %v544 = vld [vmem:[%s528 + $0x78] sm:$0xff]
  %v545 = vld [vmem:[%s528 + $0x80] sm:$0xff]
  %v546 = vld [vmem:[%s528 + $0x88] sm:$0xff]
  %v547 = vld [vmem:[%s528 + $0x90] sm:$0xff]
  %v548 = vld [vmem:[%s528 + $0x98] sm:$0xff]
  %v549 = vld [vmem:[%s528 + $0xa0] sm:$0xff]
  %v550 = vld [vmem:[%s528 + $0xa8] sm:$0xff]
  %v551 = vld [vmem:[%s528 + $0xb0] sm:$0xff]
  %v552 = vld [vmem:[%s528 + $0xb8] sm:$0xff]
  %v553 = vld [vmem:[%s528 + $0xc0] sm:$0xff]
  %v554 = vld [vmem:[%s528 + $0xc8] sm:$0xff]
  %v555 = vld [vmem:[%s528 + $0xd0] sm:$0xff]
  %v556 = vld [vmem:[%s528 + $0xd8] sm:$0xff]
  %v557 = vld [vmem:[%s528 + $0xe0] sm:$0xff]
  %v558 = vld [vmem:[%s528 + $0xe8] sm:$0xff]
  %v559 = vld [vmem:[%s528 + $0xf0] sm:$0xff]
  %v560 = vld [vmem:[%s528 + $0xf8] sm:$0xff]
  %v593 = vunpack.c.l.b16 %v529
  %v594 = vunpack.c.h.b16 %v529
  %v595 = vunpack.c.l.b16 %v530
  %v596 = vunpack.c.h.b16 %v530
  %v597 = vunpack.c.l.b16 %v531
  %v598 = vunpack.c.h.b16 %v531
  %v599 = vunpack.c.l.b16 %v532
  %v600 = vunpack.c.h.b16 %v532
  %v601 = vunpack.c.l.b16 %v533
  %v602 = vunpack.c.h.b16 %v533
  %v603 = vunpack.c.l.b16 %v534
  %v604 = vunpack.c.h.b16 %v534
  %v605 = vunpack.c.l.b16 %v535
  %v606 = vunpack.c.h.b16 %v535
  %v607 = vunpack.c.l.b16 %v536
  %v608 = vunpack.c.h.b16 %v536
  %v609 = vunpack.c.l.b16 %v537
  %v610 = vunpack.c.h.b16 %v537
  %v611 = vunpack.c.l.b16 %v538
  %v612 = vunpack.c.h.b16 %v538
  %v613 = vunpack.c.l.b16 %v539
  %v614 = vunpack.c.h.b16 %v539
  %v615 = vunpack.c.l.b16 %v540
  %v616 = vunpack.c.h.b16 %v540
  %v617 = vunpack.c.l.b16 %v541
  %v618 = vunpack.c.h.b16 %v541
  %v619 = vunpack.c.l.b16 %v542
  %v620 = vunpack.c.h.b16 %v542
  %v621 = vunpack.c.l.b16 %v543
  %v622 = vunpack.c.h.b16 %v543
  %v623 = vunpack.c.l.b16 %v544
  %v624 = vunpack.c.h.b16 %v544
  %v625 = vunpack.c.l.b16 %v545
  %v626 = vunpack.c.h.b16 %v545
  %v627 = vunpack.c.l.b16 %v546
  %v628 = vunpack.c.h.b16 %v546
  %v629 = vunpack.c.l.b16 %v547
  %v630 = vunpack.c.h.b16 %v547
  %v631 = vunpack.c.l.b16 %v548
  %v632 = vunpack.c.h.b16 %v548
  %v633 = vunpack.c.l.b16 %v549
  %v634 = vunpack.c.h.b16 %v549
  %v635 = vunpack.c.l.b16 %v550
  %v636 = vunpack.c.h.b16 %v550
  %v637 = vunpack.c.l.b16 %v551
  %v638 = vunpack.c.h.b16 %v551
  %v639 = vunpack.c.l.b16 %v552
  %v640 = vunpack.c.h.b16 %v552
  %v641 = vunpack.c.l.b16 %v553
  %v642 = vunpack.c.h.b16 %v553
  %v643 = vunpack.c.l.b16 %v554
  %v644 = vunpack.c.h.b16 %v554
  %v645 = vunpack.c.l.b16 %v555
  %v646 = vunpack.c.h.b16 %v555
  %v647 = vunpack.c.l.b16 %v556
  %v648 = vunpack.c.h.b16 %v556
  %v649 = vunpack.c.l.b16 %v557
  %v650 = vunpack.c.h.b16 %v557
  %v651 = vunpack.c.l.b16 %v558
  %v652 = vunpack.c.h.b16 %v558
  %v653 = vunpack.c.l.b16 %v559
  %v654 = vunpack.c.h.b16 %v559
  %v655 = vunpack.c.l.b16 %v560
  %v656 = vunpack.c.h.b16 %v560
  %v657 = vpack.c.b16 %v595, %v593
  %v658 = vpack.c.b16 %v596, %v594
  %v659 = vpack.c.b16 %v599, %v597
  %v660 = vpack.c.b16 %v600, %v598
  %v661 = vpack.c.b16 %v603, %v601
  %v662 = vpack.c.b16 %v604, %v602
  %v663 = vpack.c.b16 %v607, %v605
  %v664 = vpack.c.b16 %v608, %v606
  %v665 = vpack.c.b16 %v611, %v609
  %v666 = vpack.c.b16 %v612, %v610
  %v667 = vpack.c.b16 %v615, %v613
  %v668 = vpack.c.b16 %v616, %v614
  %v669 = vpack.c.b16 %v619, %v617
  %v670 = vpack.c.b16 %v620, %v618
  %v671 = vpack.c.b16 %v623, %v621
  %v672 = vpack.c.b16 %v624, %v622
  %v673 = vpack.c.b16 %v627, %v625
  %v674 = vpack.c.b16 %v628, %v626
  %v675 = vpack.c.b16 %v631, %v629
  %v676 = vpack.c.b16 %v632, %v630
  %v677 = vpack.c.b16 %v635, %v633
  %v678 = vpack.c.b16 %v636, %v634
  %v679 = vpack.c.b16 %v639, %v637
  %v680 = vpack.c.b16 %v640, %v638
  %v681 = vpack.c.b16 %v643, %v641
  %v682 = vpack.c.b16 %v644, %v642
  %v683 = vpack.c.b16 %v647, %v645
  %v684 = vpack.c.b16 %v648, %v646
  %v685 = vpack.c.b16 %v651, %v649
  %v686 = vpack.c.b16 %v652, %v650
  %v687 = vpack.c.b16 %v655, %v653
  %v688 = vpack.c.b16 %v656, %v654
  %721 = vmatpush.bf16.msra.mxu0 %v671
  %722 = vmatpush.bf16.msra.mxu0 %v669
  %723 = vmatpush.bf16.msra.mxu0 %v667
  %724 = vmatpush.bf16.msra.mxu0 %v665
  %725 = vmatpush.bf16.msra.mxu0 %v663
  %726 = vmatpush.bf16.msra.mxu0 %v661
  %727 = vmatpush.bf16.msra.mxu0 %v659
  %728 = vmatpush.bf16.msra.mxu0 %v657
  %729 = vmatmul.bf16.gmra.mxu0 %v484
  %v730 = vpop.f32.mrf.mxu0
  %v731 = vadd.f32 0.0, %v730
  %v732 = vpop.f32.mrf.mxu0
  %v733 = vadd.f32 0.0, %v732
  %734 = vmatmul.bf16.gmra.mxu0 %v486
  %v735 = vpop.f32.mrf.mxu0
  %v736 = vadd.f32 0.0, %v735
  %v737 = vpop.f32.mrf.mxu0
  %v738 = vadd.f32 0.0, %v737
  %739 = vdwg.mxu0
  %740 = vmatpush.bf16.msra.mxu0 %v687
  %741 = vmatpush.bf16.msra.mxu0 %v685
  %742 = vmatpush.bf16.msra.mxu0 %v683
  %743 = vmatpush.bf16.msra.mxu0 %v681
  %744 = vmatpush.bf16.msra.mxu0 %v679
  %745 = vmatpush.bf16.msra.mxu0 %v677
  %746 = vmatpush.bf16.msra.mxu0 %v675
  %747 = vmatpush.bf16.msra.mxu0 %v673
  %748 = vmatmul.bf16.gmra.mxu0 %v485
  %v749 = vpop.f32.mrf.mxu0
  %v750 = vadd.f32 %v731, %v749
  %v751 = vpop.f32.mrf.mxu0
  %v752 = vadd.f32 %v733, %v751
  %753 = vmatmul.bf16.gmra.mxu0 %v487
  %v754 = vpop.f32.mrf.mxu0
  %v755 = vadd.f32 %v736, %v754
  %v756 = vpop.f32.mrf.mxu0
  %v757 = vadd.f32 %v738, %v756
  %758 = vdwg.mxu0
  %759 = vmatpush.bf16.msra.mxu0 %v672
  %760 = vmatpush.bf16.msra.mxu0 %v670
  %761 = vmatpush.bf16.msra.mxu0 %v668
  %762 = vmatpush.bf16.msra.mxu0 %v666
  %763 = vmatpush.bf16.msra.mxu0 %v664
  %764 = vmatpush.bf16.msra.mxu0 %v662
  %765 = vmatpush.bf16.msra.mxu0 %v660
  %766 = vmatpush.bf16.msra.mxu0 %v658
  %767 = vmatmul.bf16.gmra.mxu0 %v484
  %v768 = vpop.f32.mrf.mxu0
  %v769 = vadd.f32 0.0, %v768
  %v770 = vpop.f32.mrf.mxu0
  %v771 = vadd.f32 0.0, %v770
  %772 = vmatmul.bf16.gmra.mxu0 %v486
  %v773 = vpop.f32.mrf.mxu0
  %v774 = vadd.f32 0.0, %v773
  %v775 = vpop.f32.mrf.mxu0
  %v776 = vadd.f32 0.0, %v775
  %777 = vdwg.mxu0
  %778 = vmatpush.bf16.msra.mxu0 %v688
  %779 = vmatpush.bf16.msra.mxu0 %v686
  %780 = vmatpush.bf16.msra.mxu0 %v684
  %781 = vmatpush.bf16.msra.mxu0 %v682
  %782 = vmatpush.bf16.msra.mxu0 %v680
  %783 = vmatpush.bf16.msra.mxu0 %v678
  %784 = vmatpush.bf16.msra.mxu0 %v676
  %785 = vmatpush.bf16.msra.mxu0 %v674
  %786 = vmatmul.bf16.gmra.mxu0 %v485
  %v787 = vpop.f32.mrf.mxu0
  %v788 = vadd.f32 %v769, %v787
  %v789 = vpop.f32.mrf.mxu0
  %v790 = vadd.f32 %v771, %v789
  %791 = vmatmul.bf16.gmra.mxu0 %v487
  %v792 = vpop.f32.mrf.mxu0
  %v793 = vadd.f32 %v774, %v792
  %v794 = vpop.f32.mrf.mxu0
  %v795 = vadd.f32 %v776, %v794
  %796 = vdwg.mxu0
  %v829 = vunpack.c.l.b16 %v496
  %v830 = vunpack.c.h.b16 %v496
  %v831 = vunpack.c.l.b16 %v497
  %v832 = vunpack.c.h.b16 %v497
  %v833 = vunpack.c.l.b16 %v498
  %v834 = vunpack.c.h.b16 %v498
  %v835 = vunpack.c.l.b16 %v499
  %v836 = vunpack.c.h.b16 %v499
  %v837 = vunpack.c.l.b16 %v500
  %v838 = vunpack.c.h.b16 %v500
  %v839 = vunpack.c.l.b16 %v501
  %v840 = vunpack.c.h.b16 %v501
  %v841 = vunpack.c.l.b16 %v502
  %v842 = vunpack.c.h.b16 %v502
  %v843 = vunpack.c.l.b16 %v503
  %v844 = vunpack.c.h.b16 %v503
  %v845 = vunpack.c.l.b16 %v504
  %v846 = vunpack.c.h.b16 %v504
  %v847 = vunpack.c.l.b16 %v505
  %v848 = vunpack.c.h.b16 %v505
  %v849 = vunpack.c.l.b16 %v506
  %v850 = vunpack.c.h.b16 %v506
  %v851 = vunpack.c.l.b16 %v507
  %v852 = vunpack.c.h.b16 %v507
  %v853 = vunpack.c.l.b16 %v508
  %v854 = vunpack.c.h.b16 %v508
  %v855 = vunpack.c.l.b16 %v509
  %v856 = vunpack.c.h.b16 %v509
  %v857 = vunpack.c.l.b16 %v510
  %v858 = vunpack.c.h.b16 %v510
  %v859 = vunpack.c.l.b16 %v511
  %v860 = vunpack.c.h.b16 %v511
  %v861 = vunpack.c.l.b16 %v512
  %v862 = vunpack.c.h.b16 %v512
  %v863 = vunpack.c.l.b16 %v513
  %v864 = vunpack.c.h.b16 %v513
  %v865 = vunpack.c.l.b16 %v514
  %v866 = vunpack.c.h.b16 %v514
  %v867 = vunpack.c.l.b16 %v515
  %v868 = vunpack.c.h.b16 %v515
  %v869 = vunpack.c.l.b16 %v516
  %v870 = vunpack.c.h.b16 %v516
  %v871 = vunpack.c.l.b16 %v517
  %v872 = vunpack.c.h.b16 %v517
  %v873 = vunpack.c.l.b16 %v518
  %v874 = vunpack.c.h.b16 %v518
  %v875 = vunpack.c.l.b16 %v519
  %v876 = vunpack.c.h.b16 %v519
  %v877 = vunpack.c.l.b16 %v520
  %v878 = vunpack.c.h.b16 %v520
  %v879 = vunpack.c.l.b16 %v521
  %v880 = vunpack.c.h.b16 %v521
  %v881 = vunpack.c.l.b16 %v522
  %v882 = vunpack.c.h.b16 %v522
  %v883 = vunpack.c.l.b16 %v523
  %v884 = vunpack.c.h.b16 %v523
  %v885 = vunpack.c.l.b16 %v524
  %v886 = vunpack.c.h.b16 %v524
  %v887 = vunpack.c.l.b16 %v525
  %v888 = vunpack.c.h.b16 %v525
  %v889 = vunpack.c.l.b16 %v526
  %v890 = vunpack.c.h.b16 %v526
  %v891 = vunpack.c.l.b16 %v527
  %v892 = vunpack.c.h.b16 %v527
  %v893 = vpack.c.b16 %v831, %v829
  %v894 = vpack.c.b16 %v832, %v830
  %v895 = vpack.c.b16 %v835, %v833
  %v896 = vpack.c.b16 %v836, %v834
  %v897 = vpack.c.b16 %v839, %v837
  %v898 = vpack.c.b16 %v840, %v838
  %v899 = vpack.c.b16 %v843, %v841
  %v900 = vpack.c.b16 %v844, %v842
  %v901 = vpack.c.b16 %v847, %v845
  %v902 = vpack.c.b16 %v848, %v846
  %v903 = vpack.c.b16 %v851, %v849
  %v904 = vpack.c.b16 %v852, %v850
  %v905 = vpack.c.b16 %v855, %v853
  %v906 = vpack.c.b16 %v856, %v854
  %v907 = vpack.c.b16 %v859, %v857
  %v908 = vpack.c.b16 %v860, %v858
  %v909 = vpack.c.b16 %v863, %v861
  %v910 = vpack.c.b16 %v864, %v862
  %v911 = vpack.c.b16 %v867, %v865
  %v912 = vpack.c.b16 %v868, %v866
  %v913 = vpack.c.b16 %v871, %v869
  %v914 = vpack.c.b16 %v872, %v870
  %v915 = vpack.c.b16 %v875, %v873
  %v916 = vpack.c.b16 %v876, %v874
  %v917 = vpack.c.b16 %v879, %v877
  %v918 = vpack.c.b16 %v880, %v878
  %v919 = vpack.c.b16 %v883, %v881
  %v920 = vpack.c.b16 %v884, %v882
  %v921 = vpack.c.b16 %v887, %v885
  %v922 = vpack.c.b16 %v888, %v886
  %v923 = vpack.c.b16 %v891, %v889
  %v924 = vpack.c.b16 %v892, %v890
  %957 = vmatpush.bf16.msra.mxu0 %v907
  %958 = vmatpush.bf16.msra.mxu0 %v905
  %959 = vmatpush.bf16.msra.mxu0 %v903
  %960 = vmatpush.bf16.msra.mxu0 %v901
  %961 = vmatpush.bf16.msra.mxu0 %v899
  %962 = vmatpush.bf16.msra.mxu0 %v897
  %963 = vmatpush.bf16.msra.mxu0 %v895
  %964 = vmatpush.bf16.msra.mxu0 %v893
  %965 = vmatmul.bf16.gmra.mxu0 %v480
  %v966 = vpop.f32.mrf.mxu0
  %v967 = vadd.f32 %v750, %v966
  %v968 = vpop.f32.mrf.mxu0
  %v969 = vadd.f32 %v752, %v968
  %970 = vmatmul.bf16.gmra.mxu0 %v482
  %v971 = vpop.f32.mrf.mxu0
  %v972 = vadd.f32 %v755, %v971
  %v973 = vpop.f32.mrf.mxu0
  %v974 = vadd.f32 %v757, %v973
  %975 = vdwg.mxu0
  %976 = vmatpush.bf16.msra.mxu0 %v923
  %977 = vmatpush.bf16.msra.mxu0 %v921
  %978 = vmatpush.bf16.msra.mxu0 %v919
  %979 = vmatpush.bf16.msra.mxu0 %v917
  %980 = vmatpush.bf16.msra.mxu0 %v915
  %981 = vmatpush.bf16.msra.mxu0 %v913
  %982 = vmatpush.bf16.msra.mxu0 %v911
  %983 = vmatpush.bf16.msra.mxu0 %v909
  %984 = vmatmul.bf16.gmra.mxu0 %v481
  %v985 = vpop.f32.mrf.mxu0
  %v986 = vadd.f32 %v967, %v985
  %v987 = vpop.f32.mrf.mxu0
  %v988 = vadd.f32 %v969, %v987
  %989 = vmatmul.bf16.gmra.mxu0 %v483
  %v990 = vpop.f32.mrf.mxu0
  %v991 = vadd.f32 %v972, %v990
  %v992 = vpop.f32.mrf.mxu0
  %v993 = vadd.f32 %v974, %v992
  %994 = vdwg.mxu0
  %995 = vmatpush.bf16.msra.mxu0 %v908
  %996 = vmatpush.bf16.msra.mxu0 %v906
  %997 = vmatpush.bf16.msra.mxu0 %v904
  %998 = vmatpush.bf16.msra.mxu0 %v902
  %999 = vmatpush.bf16.msra.mxu0 %v900
  %1000 = vmatpush.bf16.msra.mxu0 %v898
  %1001 = vmatpush.bf16.msra.mxu0 %v896
  %1002 = vmatpush.bf16.msra.mxu0 %v894
  %1003 = vmatmul.bf16.gmra.mxu0 %v480
  %v1004 = vpop.f32.mrf.mxu0
  %v1005 = vadd.f32 %v788, %v1004
  %v1006 = vpop.f32.mrf.mxu0
  %v1007 = vadd.f32 %v790, %v1006
  %1008 = vmatmul.bf16.gmra.mxu0 %v482
  %v1009 = vpop.f32.mrf.mxu0
  %v1010 = vadd.f32 %v793, %v1009
  %v1011 = vpop.f32.mrf.mxu0
  %v1012 = vadd.f32 %v795, %v1011
  %1013 = vdwg.mxu0
  %1014 = vmatpush.bf16.msra.mxu0 %v924
  %1015 = vmatpush.bf16.msra.mxu0 %v922
  %1016 = vmatpush.bf16.msra.mxu0 %v920
  %1017 = vmatpush.bf16.msra.mxu0 %v918
  %1018 = vmatpush.bf16.msra.mxu0 %v916
  %1019 = vmatpush.bf16.msra.mxu0 %v914
  %1020 = vmatpush.bf16.msra.mxu0 %v912
  %1021 = vmatpush.bf16.msra.mxu0 %v910
  %1022 = vmatmul.bf16.gmra.mxu0 %v481
  %v1023 = vpop.f32.mrf.mxu0
  %v1024 = vadd.f32 %v1005, %v1023
  %v1025 = vpop.f32.mrf.mxu0
  %v1026 = vadd.f32 %v1007, %v1025
  %1027 = vmatmul.bf16.gmra.mxu0 %v483
  %v1028 = vpop.f32.mrf.mxu0
  %v1029 = vadd.f32 %v1010, %v1028
  %v1030 = vpop.f32.mrf.mxu0
  %v1031 = vadd.f32 %v1012, %v1030
  %1032 = vdwg.mxu0
  %s1033 = scalar_lea.vmem %s5, 512
  %v1034 = vld [vmem:[%s1033] sm:$0xff]
  %v1035 = vld [vmem:[%s1033 + $0x8] sm:$0xff]
  %v1036 = vld [vmem:[%s1033 + $0x10] sm:$0xff]
  %v1037 = vld [vmem:[%s1033 + $0x18] sm:$0xff]
  %v1038 = vld [vmem:[%s1033 + $0x20] sm:$0xff]
  %v1039 = vld [vmem:[%s1033 + $0x28] sm:$0xff]
  %v1040 = vld [vmem:[%s1033 + $0x30] sm:$0xff]
  %v1041 = vld [vmem:[%s1033 + $0x38] sm:$0xff]
  %v1042 = vld [vmem:[%s1033 + $0x40] sm:$0xff]
  %v1043 = vld [vmem:[%s1033 + $0x48] sm:$0xff]
  %v1044 = vld [vmem:[%s1033 + $0x50] sm:$0xff]
  %v1045 = vld [vmem:[%s1033 + $0x58] sm:$0xff]
  %v1046 = vld [vmem:[%s1033 + $0x60] sm:$0xff]
  %v1047 = vld [vmem:[%s1033 + $0x68] sm:$0xff]
  %v1048 = vld [vmem:[%s1033 + $0x70] sm:$0xff]
  %v1049 = vld [vmem:[%s1033 + $0x78] sm:$0xff]
  %v1050 = vld [vmem:[%s1033 + $0x80] sm:$0xff]
  %v1051 = vld [vmem:[%s1033 + $0x88] sm:$0xff]
  %v1052 = vld [vmem:[%s1033 + $0x90] sm:$0xff]
  %v1053 = vld [vmem:[%s1033 + $0x98] sm:$0xff]
  %v1054 = vld [vmem:[%s1033 + $0xa0] sm:$0xff]
  %v1055 = vld [vmem:[%s1033 + $0xa8] sm:$0xff]
  %v1056 = vld [vmem:[%s1033 + $0xb0] sm:$0xff]
  %v1057 = vld [vmem:[%s1033 + $0xb8] sm:$0xff]
  %v1058 = vld [vmem:[%s1033 + $0xc0] sm:$0xff]
  %v1059 = vld [vmem:[%s1033 + $0xc8] sm:$0xff]
  %v1060 = vld [vmem:[%s1033 + $0xd0] sm:$0xff]
  %v1061 = vld [vmem:[%s1033 + $0xd8] sm:$0xff]
  %v1062 = vld [vmem:[%s1033 + $0xe0] sm:$0xff]
  %v1063 = vld [vmem:[%s1033 + $0xe8] sm:$0xff]
  %v1064 = vld [vmem:[%s1033 + $0xf0] sm:$0xff]
  %v1065 = vld [vmem:[%s1033 + $0xf8] sm:$0xff]
  %v1098 = vunpack.c.l.b16 %v1034
  %v1099 = vunpack.c.h.b16 %v1034
  %v1100 = vunpack.c.l.b16 %v1035
  %v1101 = vunpack.c.h.b16 %v1035
  %v1102 = vunpack.c.l.b16 %v1036
  %v1103 = vunpack.c.h.b16 %v1036
  %v1104 = vunpack.c.l.b16 %v1037
  %v1105 = vunpack.c.h.b16 %v1037
  %v1106 = vunpack.c.l.b16 %v1038
  %v1107 = vunpack.c.h.b16 %v1038
  %v1108 = vunpack.c.l.b16 %v1039
  %v1109 = vunpack.c.h.b16 %v1039
  %v1110 = vunpack.c.l.b16 %v1040
  %v1111 = vunpack.c.h.b16 %v1040
  %v1112 = vunpack.c.l.b16 %v1041
  %v1113 = vunpack.c.h.b16 %v1041
  %v1114 = vunpack.c.l.b16 %v1042
  %v1115 = vunpack.c.h.b16 %v1042
  %v1116 = vunpack.c.l.b16 %v1043
  %v1117 = vunpack.c.h.b16 %v1043
  %v1118 = vunpack.c.l.b16 %v1044
  %v1119 = vunpack.c.h.b16 %v1044
  %v1120 = vunpack.c.l.b16 %v1045
  %v1121 = vunpack.c.h.b16 %v1045
  %v1122 = vunpack.c.l.b16 %v1046
  %v1123 = vunpack.c.h.b16 %v1046
  %v1124 = vunpack.c.l.b16 %v1047
  %v1125 = vunpack.c.h.b16 %v1047
  %v1126 = vunpack.c.l.b16 %v1048
  %v1127 = vunpack.c.h.b16 %v1048
  %v1128 = vunpack.c.l.b16 %v1049
  %v1129 = vunpack.c.h.b16 %v1049
  %v1130 = vunpack.c.l.b16 %v1050
  %v1131 = vunpack.c.h.b16 %v1050
  %v1132 = vunpack.c.l.b16 %v1051
  %v1133 = vunpack.c.h.b16 %v1051
  %v1134 = vunpack.c.l.b16 %v1052
  %v1135 = vunpack.c.h.b16 %v1052
  %v1136 = vunpack.c.l.b16 %v1053
  %v1137 = vunpack.c.h.b16 %v1053
  %v1138 = vunpack.c.l.b16 %v1054
  %v1139 = vunpack.c.h.b16 %v1054
  %v1140 = vunpack.c.l.b16 %v1055
  %v1141 = vunpack.c.h.b16 %v1055
  %v1142 = vunpack.c.l.b16 %v1056
  %v1143 = vunpack.c.h.b16 %v1056
  %v1144 = vunpack.c.l.b16 %v1057
  %v1145 = vunpack.c.h.b16 %v1057
  %v1146 = vunpack.c.l.b16 %v1058
  %v1147 = vunpack.c.h.b16 %v1058
  %v1148 = vunpack.c.l.b16 %v1059
  %v1149 = vunpack.c.h.b16 %v1059
  %v1150 = vunpack.c.l.b16 %v1060
  %v1151 = vunpack.c.h.b16 %v1060
  %v1152 = vunpack.c.l.b16 %v1061
  %v1153 = vunpack.c.h.b16 %v1061
  %v1154 = vunpack.c.l.b16 %v1062
  %v1155 = vunpack.c.h.b16 %v1062
  %v1156 = vunpack.c.l.b16 %v1063
  %v1157 = vunpack.c.h.b16 %v1063
  %v1158 = vunpack.c.l.b16 %v1064
  %v1159 = vunpack.c.h.b16 %v1064
  %v1160 = vunpack.c.l.b16 %v1065
  %v1161 = vunpack.c.h.b16 %v1065
  %v1162 = vpack.c.b16 %v1100, %v1098
  %v1163 = vpack.c.b16 %v1101, %v1099
  %v1164 = vpack.c.b16 %v1104, %v1102
  %v1165 = vpack.c.b16 %v1105, %v1103
  %v1166 = vpack.c.b16 %v1108, %v1106
  %v1167 = vpack.c.b16 %v1109, %v1107
  %v1168 = vpack.c.b16 %v1112, %v1110
  %v1169 = vpack.c.b16 %v1113, %v1111
  %v1170 = vpack.c.b16 %v1116, %v1114
  %v1171 = vpack.c.b16 %v1117, %v1115
  %v1172 = vpack.c.b16 %v1120, %v1118
  %v1173 = vpack.c.b16 %v1121, %v1119
  %v1174 = vpack.c.b16 %v1124, %v1122
  %v1175 = vpack.c.b16 %v1125, %v1123
  %v1176 = vpack.c.b16 %v1128, %v1126
  %v1177 = vpack.c.b16 %v1129, %v1127
  %v1178 = vpack.c.b16 %v1132, %v1130
  %v1179 = vpack.c.b16 %v1133, %v1131
  %v1180 = vpack.c.b16 %v1136, %v1134
  %v1181 = vpack.c.b16 %v1137, %v1135
  %v1182 = vpack.c.b16 %v1140, %v1138
  %v1183 = vpack.c.b16 %v1141, %v1139
  %v1184 = vpack.c.b16 %v1144, %v1142
  %v1185 = vpack.c.b16 %v1145, %v1143
  %v1186 = vpack.c.b16 %v1148, %v1146
  %v1187 = vpack.c.b16 %v1149, %v1147
  %v1188 = vpack.c.b16 %v1152, %v1150
  %v1189 = vpack.c.b16 %v1153, %v1151
  %v1190 = vpack.c.b16 %v1156, %v1154
  %v1191 = vpack.c.b16 %v1157, %v1155
  %v1192 = vpack.c.b16 %v1160, %v1158
  %v1193 = vpack.c.b16 %v1161, %v1159
  %1226 = vmatpush.bf16.msra.mxu0 %v1176
  %1227 = vmatpush.bf16.msra.mxu0 %v1174
  %1228 = vmatpush.bf16.msra.mxu0 %v1172
  %1229 = vmatpush.bf16.msra.mxu0 %v1170
  %1230 = vmatpush.bf16.msra.mxu0 %v1168
  %1231 = vmatpush.bf16.msra.mxu0 %v1166
  %1232 = vmatpush.bf16.msra.mxu0 %v1164
  %1233 = vmatpush.bf16.msra.mxu0 %v1162
  %1234 = vmatmul.bf16.gmra.mxu0 %v488
  %v1235 = vpop.f32.mrf.mxu0
  %v1236 = vadd.f32 0.0, %v1235
  %v1237 = vpop.f32.mrf.mxu0
  %v1238 = vadd.f32 0.0, %v1237
  %1239 = vmatmul.bf16.gmra.mxu0 %v490
  %v1240 = vpop.f32.mrf.mxu0
  %v1241 = vadd.f32 0.0, %v1240
  %v1242 = vpop.f32.mrf.mxu0
  %v1243 = vadd.f32 0.0, %v1242
  %1244 = vdwg.mxu0
  %1245 = vmatpush.bf16.msra.mxu0 %v1192
  %1246 = vmatpush.bf16.msra.mxu0 %v1190
  %1247 = vmatpush.bf16.msra.mxu0 %v1188
  %1248 = vmatpush.bf16.msra.mxu0 %v1186
  %1249 = vmatpush.bf16.msra.mxu0 %v1184
  %1250 = vmatpush.bf16.msra.mxu0 %v1182
  %1251 = vmatpush.bf16.msra.mxu0 %v1180
  %1252 = vmatpush.bf16.msra.mxu0 %v1178
  %1253 = vmatmul.bf16.gmra.mxu0 %v489
  %v1254 = vpop.f32.mrf.mxu0
  %v1255 = vadd.f32 %v1236, %v1254
  %v1256 = vpop.f32.mrf.mxu0
  %v1257 = vadd.f32 %v1238, %v1256
  %1258 = vmatmul.bf16.gmra.mxu0 %v491
  %v1259 = vpop.f32.mrf.mxu0
  %v1260 = vadd.f32 %v1241, %v1259
  %v1261 = vpop.f32.mrf.mxu0
  %v1262 = vadd.f32 %v1243, %v1261
  %1263 = vdwg.mxu0
  %1264 = vmatpush.bf16.msra.mxu0 %v1177
  %1265 = vmatpush.bf16.msra.mxu0 %v1175
  %1266 = vmatpush.bf16.msra.mxu0 %v1173
  %1267 = vmatpush.bf16.msra.mxu0 %v1171
  %1268 = vmatpush.bf16.msra.mxu0 %v1169
  %1269 = vmatpush.bf16.msra.mxu0 %v1167
  %1270 = vmatpush.bf16.msra.mxu0 %v1165
  %1271 = vmatpush.bf16.msra.mxu0 %v1163
  %1272 = vmatmul.bf16.gmra.mxu0 %v488
  %v1273 = vpop.f32.mrf.mxu0
  %v1274 = vadd.f32 0.0, %v1273
  %v1275 = vpop.f32.mrf.mxu0
  %v1276 = vadd.f32 0.0, %v1275
  %1277 = vmatmul.bf16.gmra.mxu0 %v490
  %v1278 = vpop.f32.mrf.mxu0
  %v1279 = vadd.f32 0.0, %v1278
  %v1280 = vpop.f32.mrf.mxu0
  %v1281 = vadd.f32 0.0, %v1280
  %1282 = vdwg.mxu0
  %1283 = vmatpush.bf16.msra.mxu0 %v1193
  %1284 = vmatpush.bf16.msra.mxu0 %v1191
  %1285 = vmatpush.bf16.msra.mxu0 %v1189
  %1286 = vmatpush.bf16.msra.mxu0 %v1187
  %1287 = vmatpush.bf16.msra.mxu0 %v1185
  %1288 = vmatpush.bf16.msra.mxu0 %v1183
  %1289 = vmatpush.bf16.msra.mxu0 %v1181
  %1290 = vmatpush.bf16.msra.mxu0 %v1179
  %1291 = vmatmul.bf16.gmra.mxu0 %v489
  %v1292 = vpop.f32.mrf.mxu0
  %v1293 = vadd.f32 %v1274, %v1292
  %v1294 = vpop.f32.mrf.mxu0
  %v1295 = vadd.f32 %v1276, %v1294
  %1296 = vmatmul.bf16.gmra.mxu0 %v491
  %v1297 = vpop.f32.mrf.mxu0
  %v1298 = vadd.f32 %v1279, %v1297
  %v1299 = vpop.f32.mrf.mxu0
  %v1300 = vadd.f32 %v1281, %v1299
  %1301 = vdwg.mxu0
  %v1302 = vadd.f32 %v986, %v1255
  %v1303 = vadd.f32 %v1024, %v1293
  %v1304 = vadd.f32 %v988, %v1257
  %v1305 = vadd.f32 %v1026, %v1295
  %v1306 = vadd.f32 %v991, %v1260
  %v1307 = vadd.f32 %v1029, %v1298
  %v1308 = vadd.f32 %v993, %v1262
  %v1309 = vadd.f32 %v1031, %v1300
  %1310 = vmatpush.bf16.msra.mxu0 %v671
  %1311 = vmatpush.bf16.msra.mxu0 %v669
  %1312 = vmatpush.bf16.msra.mxu0 %v667
  %1313 = vmatpush.bf16.msra.mxu0 %v665
  %1314 = vmatpush.bf16.msra.mxu0 %v663
  %1315 = vmatpush.bf16.msra.mxu0 %v661
  %1316 = vmatpush.bf16.msra.mxu0 %v659
  %1317 = vmatpush.bf16.msra.mxu0 %v657
  %1318 = vmatmul.bf16.gmra.mxu0 %v488
  %v1319 = vpop.f32.mrf.mxu0
  %v1320 = vadd.f32 0.0, %v1319
  %v1321 = vpop.f32.mrf.mxu0
  %v1322 = vadd.f32 0.0, %v1321
  %1323 = vmatmul.bf16.gmra.mxu0 %v490
  %v1324 = vpop.f32.mrf.mxu0
  %v1325 = vadd.f32 0.0, %v1324
  %v1326 = vpop.f32.mrf.mxu0
  %v1327 = vadd.f32 0.0, %v1326
  %1328 = vdwg.mxu0
  %1329 = vmatpush.bf16.msra.mxu0 %v687
  %1330 = vmatpush.bf16.msra.mxu0 %v685
  %1331 = vmatpush.bf16.msra.mxu0 %v683
  %1332 = vmatpush.bf16.msra.mxu0 %v681
  %1333 = vmatpush.bf16.msra.mxu0 %v679
  %1334 = vmatpush.bf16.msra.mxu0 %v677
  %1335 = vmatpush.bf16.msra.mxu0 %v675
  %1336 = vmatpush.bf16.msra.mxu0 %v673
  %1337 = vmatmul.bf16.gmra.mxu0 %v489
  %v1338 = vpop.f32.mrf.mxu0
  %v1339 = vadd.f32 %v1320, %v1338
  %v1340 = vpop.f32.mrf.mxu0
  %v1341 = vadd.f32 %v1322, %v1340
  %1342 = vmatmul.bf16.gmra.mxu0 %v491
  %v1343 = vpop.f32.mrf.mxu0
  %v1344 = vadd.f32 %v1325, %v1343
  %v1345 = vpop.f32.mrf.mxu0
  %v1346 = vadd.f32 %v1327, %v1345
  %1347 = vdwg.mxu0
  %1348 = vmatpush.bf16.msra.mxu0 %v672
  %1349 = vmatpush.bf16.msra.mxu0 %v670
  %1350 = vmatpush.bf16.msra.mxu0 %v668
  %1351 = vmatpush.bf16.msra.mxu0 %v666
  %1352 = vmatpush.bf16.msra.mxu0 %v664
  %1353 = vmatpush.bf16.msra.mxu0 %v662
  %1354 = vmatpush.bf16.msra.mxu0 %v660
  %1355 = vmatpush.bf16.msra.mxu0 %v658
  %1356 = vmatmul.bf16.gmra.mxu0 %v488
  %v1357 = vpop.f32.mrf.mxu0
  %v1358 = vadd.f32 0.0, %v1357
  %v1359 = vpop.f32.mrf.mxu0
  %v1360 = vadd.f32 0.0, %v1359
  %1361 = vmatmul.bf16.gmra.mxu0 %v490
  %v1362 = vpop.f32.mrf.mxu0
  %v1363 = vadd.f32 0.0, %v1362
  %v1364 = vpop.f32.mrf.mxu0
  %v1365 = vadd.f32 0.0, %v1364
  %1366 = vdwg.mxu0
  %1367 = vmatpush.bf16.msra.mxu0 %v688
  %1368 = vmatpush.bf16.msra.mxu0 %v686
  %1369 = vmatpush.bf16.msra.mxu0 %v684
  %1370 = vmatpush.bf16.msra.mxu0 %v682
  %1371 = vmatpush.bf16.msra.mxu0 %v680
  %1372 = vmatpush.bf16.msra.mxu0 %v678
  %1373 = vmatpush.bf16.msra.mxu0 %v676
  %1374 = vmatpush.bf16.msra.mxu0 %v674
  %1375 = vmatmul.bf16.gmra.mxu0 %v489
  %v1376 = vpop.f32.mrf.mxu0
  %v1377 = vadd.f32 %v1358, %v1376
  %v1378 = vpop.f32.mrf.mxu0
  %v1379 = vadd.f32 %v1360, %v1378
  %1380 = vmatmul.bf16.gmra.mxu0 %v491
  %v1381 = vpop.f32.mrf.mxu0
  %v1382 = vadd.f32 %v1363, %v1381
  %v1383 = vpop.f32.mrf.mxu0
  %v1384 = vadd.f32 %v1365, %v1383
  %1385 = vdwg.mxu0
  %1386 = vmatpush.bf16.msra.mxu0 %v907
  %1387 = vmatpush.bf16.msra.mxu0 %v905
  %1388 = vmatpush.bf16.msra.mxu0 %v903
  %1389 = vmatpush.bf16.msra.mxu0 %v901
  %1390 = vmatpush.bf16.msra.mxu0 %v899
  %1391 = vmatpush.bf16.msra.mxu0 %v897
  %1392 = vmatpush.bf16.msra.mxu0 %v895
  %1393 = vmatpush.bf16.msra.mxu0 %v893
  %1394 = vmatmul.bf16.gmra.mxu0 %v484
  %v1395 = vpop.f32.mrf.mxu0
  %v1396 = vadd.f32 %v1339, %v1395
  %v1397 = vpop.f32.mrf.mxu0
  %v1398 = vadd.f32 %v1341, %v1397
  %1399 = vmatmul.bf16.gmra.mxu0 %v486
  %v1400 = vpop.f32.mrf.mxu0
  %v1401 = vadd.f32 %v1344, %v1400
  %v1402 = vpop.f32.mrf.mxu0
  %v1403 = vadd.f32 %v1346, %v1402
  %1404 = vdwg.mxu0
  %1405 = vmatpush.bf16.msra.mxu0 %v923
  %1406 = vmatpush.bf16.msra.mxu0 %v921
  %1407 = vmatpush.bf16.msra.mxu0 %v919
  %1408 = vmatpush.bf16.msra.mxu0 %v917
  %1409 = vmatpush.bf16.msra.mxu0 %v915
  %1410 = vmatpush.bf16.msra.mxu0 %v913
  %1411 = vmatpush.bf16.msra.mxu0 %v911
  %1412 = vmatpush.bf16.msra.mxu0 %v909
  %1413 = vmatmul.bf16.gmra.mxu0 %v485
  %v1414 = vpop.f32.mrf.mxu0
  %v1415 = vadd.f32 %v1396, %v1414
  %v1416 = vpop.f32.mrf.mxu0
  %v1417 = vadd.f32 %v1398, %v1416
  %1418 = vmatmul.bf16.gmra.mxu0 %v487
  %v1419 = vpop.f32.mrf.mxu0
  %v1420 = vadd.f32 %v1401, %v1419
  %v1421 = vpop.f32.mrf.mxu0
  %v1422 = vadd.f32 %v1403, %v1421
  %1423 = vdwg.mxu0
  %1424 = vmatpush.bf16.msra.mxu0 %v908
  %1425 = vmatpush.bf16.msra.mxu0 %v906
  %1426 = vmatpush.bf16.msra.mxu0 %v904
  %1427 = vmatpush.bf16.msra.mxu0 %v902
  %1428 = vmatpush.bf16.msra.mxu0 %v900
  %1429 = vmatpush.bf16.msra.mxu0 %v898
  %1430 = vmatpush.bf16.msra.mxu0 %v896
  %1431 = vmatpush.bf16.msra.mxu0 %v894
  %1432 = vmatmul.bf16.gmra.mxu0 %v484
  %v1433 = vpop.f32.mrf.mxu0
  %v1434 = vadd.f32 %v1377, %v1433
  %v1435 = vpop.f32.mrf.mxu0
  %v1436 = vadd.f32 %v1379, %v1435
  %1437 = vmatmul.bf16.gmra.mxu0 %v486
  %v1438 = vpop.f32.mrf.mxu0
  %v1439 = vadd.f32 %v1382, %v1438
  %v1440 = vpop.f32.mrf.mxu0
  %v1441 = vadd.f32 %v1384, %v1440
  %1442 = vdwg.mxu0
  %1443 = vmatpush.bf16.msra.mxu0 %v924
  %1444 = vmatpush.bf16.msra.mxu0 %v922
  %1445 = vmatpush.bf16.msra.mxu0 %v920
  %1446 = vmatpush.bf16.msra.mxu0 %v918
  %1447 = vmatpush.bf16.msra.mxu0 %v916
  %1448 = vmatpush.bf16.msra.mxu0 %v914
  %1449 = vmatpush.bf16.msra.mxu0 %v912
  %1450 = vmatpush.bf16.msra.mxu0 %v910
  %1451 = vmatmul.bf16.gmra.mxu0 %v485
  %v1452 = vpop.f32.mrf.mxu0
  %v1453 = vadd.f32 %v1434, %v1452
  %v1454 = vpop.f32.mrf.mxu0
  %v1455 = vadd.f32 %v1436, %v1454
  %1456 = vmatmul.bf16.gmra.mxu0 %v487
  %v1457 = vpop.f32.mrf.mxu0
  %v1458 = vadd.f32 %v1439, %v1457
  %v1459 = vpop.f32.mrf.mxu0
  %v1460 = vadd.f32 %v1441, %v1459
  %1461 = vdwg.mxu0
  %1462 = vmatpush.bf16.msra.mxu0 %v1176
  %1463 = vmatpush.bf16.msra.mxu0 %v1174
  %1464 = vmatpush.bf16.msra.mxu0 %v1172
  %1465 = vmatpush.bf16.msra.mxu0 %v1170
  %1466 = vmatpush.bf16.msra.mxu0 %v1168
  %1467 = vmatpush.bf16.msra.mxu0 %v1166
  %1468 = vmatpush.bf16.msra.mxu0 %v1164
  %1469 = vmatpush.bf16.msra.mxu0 %v1162
  %1470 = vmatmul.bf16.gmra.mxu0 %v492
  %v1471 = vpop.f32.mrf.mxu0
  %v1472 = vadd.f32 0.0, %v1471
  %v1473 = vpop.f32.mrf.mxu0
  %v1474 = vadd.f32 0.0, %v1473
  %1475 = vmatmul.bf16.gmra.mxu0 %v494
  %v1476 = vpop.f32.mrf.mxu0
  %v1477 = vadd.f32 0.0, %v1476
  %v1478 = vpop.f32.mrf.mxu0
  %v1479 = vadd.f32 0.0, %v1478
  %1480 = vdwg.mxu0
  %1481 = vmatpush.bf16.msra.mxu0 %v1192
  %1482 = vmatpush.bf16.msra.mxu0 %v1190
  %1483 = vmatpush.bf16.msra.mxu0 %v1188
  %1484 = vmatpush.bf16.msra.mxu0 %v1186
  %1485 = vmatpush.bf16.msra.mxu0 %v1184
  %1486 = vmatpush.bf16.msra.mxu0 %v1182
  %1487 = vmatpush.bf16.msra.mxu0 %v1180
  %1488 = vmatpush.bf16.msra.mxu0 %v1178
  %1489 = vmatmul.bf16.gmra.mxu0 %v493
  %v1490 = vpop.f32.mrf.mxu0
  %v1491 = vadd.f32 %v1472, %v1490
  %v1492 = vpop.f32.mrf.mxu0
  %v1493 = vadd.f32 %v1474, %v1492
  %1494 = vmatmul.bf16.gmra.mxu0 %v495
  %v1495 = vpop.f32.mrf.mxu0
  %v1496 = vadd.f32 %v1477, %v1495
  %v1497 = vpop.f32.mrf.mxu0
  %v1498 = vadd.f32 %v1479, %v1497
  %1499 = vdwg.mxu0
  %1500 = vmatpush.bf16.msra.mxu0 %v1177
  %1501 = vmatpush.bf16.msra.mxu0 %v1175
  %1502 = vmatpush.bf16.msra.mxu0 %v1173
  %1503 = vmatpush.bf16.msra.mxu0 %v1171
  %1504 = vmatpush.bf16.msra.mxu0 %v1169
  %1505 = vmatpush.bf16.msra.mxu0 %v1167
  %1506 = vmatpush.bf16.msra.mxu0 %v1165
  %1507 = vmatpush.bf16.msra.mxu0 %v1163
  %1508 = vmatmul.bf16.gmra.mxu0 %v492
  %v1509 = vpop.f32.mrf.mxu0
  %v1510 = vadd.f32 0.0, %v1509
  %v1511 = vpop.f32.mrf.mxu0
  %v1512 = vadd.f32 0.0, %v1511
  %1513 = vmatmul.bf16.gmra.mxu0 %v494
  %v1514 = vpop.f32.mrf.mxu0
  %v1515 = vadd.f32 0.0, %v1514
  %v1516 = vpop.f32.mrf.mxu0
  %v1517 = vadd.f32 0.0, %v1516
  %1518 = vdwg.mxu0
  %1519 = vmatpush.bf16.msra.mxu0 %v1193
  %1520 = vmatpush.bf16.msra.mxu0 %v1191
  %1521 = vmatpush.bf16.msra.mxu0 %v1189
  %1522 = vmatpush.bf16.msra.mxu0 %v1187
  %1523 = vmatpush.bf16.msra.mxu0 %v1185
  %1524 = vmatpush.bf16.msra.mxu0 %v1183
  %1525 = vmatpush.bf16.msra.mxu0 %v1181
  %1526 = vmatpush.bf16.msra.mxu0 %v1179
  %1527 = vmatmul.bf16.gmra.mxu0 %v493
  %v1528 = vpop.f32.mrf.mxu0
  %v1529 = vadd.f32 %v1510, %v1528
  %v1530 = vpop.f32.mrf.mxu0
  %v1531 = vadd.f32 %v1512, %v1530
  %1532 = vmatmul.bf16.gmra.mxu0 %v495
  %v1533 = vpop.f32.mrf.mxu0
  %v1534 = vadd.f32 %v1515, %v1533
  %v1535 = vpop.f32.mrf.mxu0
  %v1536 = vadd.f32 %v1517, %v1535
  %1537 = vdwg.mxu0
  %v1538 = vadd.f32 %v1415, %v1491
  %v1539 = vadd.f32 %v1453, %v1529
  %v1540 = vadd.f32 %v1417, %v1493
  %v1541 = vadd.f32 %v1455, %v1531
  %v1542 = vadd.f32 %v1420, %v1496
  %v1543 = vadd.f32 %v1458, %v1534
  %v1544 = vadd.f32 %v1422, %v1498
  %v1545 = vadd.f32 %v1460, %v1536
  %v1546 = vmax.f32 %v1302, %v1538
  %v1547 = vmax.f32 %v1303, %v1539
  %v1548 = vmax.f32 %v1304, %v1540
  %v1549 = vmax.f32 %v1305, %v1541
  %v1550 = vmax.f32 %v1306, %v1542
  %v1551 = vmax.f32 %v1307, %v1543
  %v1552 = vmax.f32 %v1308, %v1544
  %v1553 = vmax.f32 %v1309, %v1545
  %v1554 = vld [vmem:[%s6] sm:$0x3]
  %v1556 = vperm.slane %v1554, 0
  %v1557 = vperm.slane %v1554, 1
  %v1560 = vadd.f32 %v1546, %v1556
  %v1561 = vadd.f32 %v1547, %v1557
  %v1562 = vadd.f32 %v1548, %v1556
  %v1563 = vadd.f32 %v1549, %v1557
  %v1564 = vadd.f32 %v1550, %v1556
  %v1565 = vadd.f32 %v1551, %v1557
  %v1566 = vadd.f32 %v1552, %v1556
  %v1567 = vadd.f32 %v1553, %v1557
  %v1568 = vmax.f32 %v1560, 0.0
  %v1569 = vmax.f32 %v1561, 0.0
  %v1570 = vmax.f32 %v1562, 0.0
  %v1571 = vmax.f32 %v1563, 0.0
  %v1572 = vmax.f32 %v1564, 0.0
  %v1573 = vmax.f32 %v1565, 0.0
  %v1574 = vmax.f32 %v1566, 0.0
  %v1575 = vmax.f32 %v1567, 0.0
  %1584 = vrot.lane.b32.xlu0 %v1568, 96
  %v1585 = vpop.permute.xlu0 %1584
  %1586 = vrot.lane.b32.xlu0 %v1569, 96
  %v1587 = vpop.permute.xlu0 %1586
  %1588 = vrot.lane.b32.xlu0 %v1570, 96
  %v1589 = vpop.permute.xlu0 %1588
  %1590 = vrot.lane.b32.xlu0 %v1571, 96
  %v1591 = vpop.permute.xlu0 %1590
  %1592 = vrot.lane.b32.xlu0 %v1572, 96
  %v1593 = vpop.permute.xlu0 %1592
  %1594 = vrot.lane.b32.xlu0 %v1573, 96
  %v1595 = vpop.permute.xlu0 %1594
  %1596 = vrot.lane.b32.xlu0 %v1574, 96
  %v1597 = vpop.permute.xlu0 %1596
  %1598 = vrot.lane.b32.xlu0 %v1575, 96
  %v1599 = vpop.permute.xlu0 %1598
  %vm1600 = vcmask 785408
  %v1601 = vsel %vm1600, %v1585, %v1587
  %v1602 = vsel %vm1600, %v1589, %v1591
  %v1603 = vsel %vm1600, %v1593, %v1595
  %v1604 = vsel %vm1600, %v1597, %v1599
  %v1617 = vsel %vm1600, %v1587, %v1585
  %v1618 = vsel %vm1600, %v1591, %v1589
  %v1619 = vsel %vm1600, %v1595, %v1593
  %v1620 = vsel %vm1600, %v1599, %v1597
  %v1621 = vmax.f32 %v1568, %v1601
  %v1622 = vmax.f32 %v1569, %v1617
  %v1623 = vmax.f32 %v1570, %v1602
  %v1624 = vmax.f32 %v1571, %v1618
  %v1625 = vmax.f32 %v1572, %v1603
  %v1626 = vmax.f32 %v1573, %v1619
  %v1627 = vmax.f32 %v1574, %v1604
  %v1628 = vmax.f32 %v1575, %v1620
  %v1629 = vpack.c.bf16 %v1621, %v1621
  %v1630 = vpack.c.bf16 %v1622, %v1622
  %v1631 = vld [vmem:[%s7] sm:$0xf]
  %v1632 = vld [vmem:[%s7 + $0x4] sm:$0xf]
  %v1633 = vld [vmem:[%s7 + $0x8] sm:$0xf]
  %v1634 = vld [vmem:[%s7 + $0xc] sm:$0xf]
  %v1635 = vld [vmem:[%s7 + $0x10] sm:$0xf]
  %v1636 = vld [vmem:[%s7 + $0x14] sm:$0xf]
  %v1637 = vld [vmem:[%s7 + $0x18] sm:$0xf]
  %v1638 = vld [vmem:[%s7 + $0x1c] sm:$0xf]
  %v1639 = vld [vmem:[%s7 + $0x20] sm:$0xf]
  %v1640 = vld [vmem:[%s7 + $0x24] sm:$0xf]
  %v1641 = vld [vmem:[%s7 + $0x28] sm:$0xf]
  %v1642 = vld [vmem:[%s7 + $0x2c] sm:$0xf]
  %v1643 = vld [vmem:[%s7 + $0x30] sm:$0xf]
  %v1644 = vld [vmem:[%s7 + $0x34] sm:$0xf]
  %v1645 = vld [vmem:[%s7 + $0x38] sm:$0xf]
  %v1646 = vld [vmem:[%s7 + $0x3c] sm:$0xf]
  %v1647 = vld [vmem:[%s7 + $0x40] sm:$0xf]
  %v1648 = vld [vmem:[%s7 + $0x44] sm:$0xf]
  %v1649 = vld [vmem:[%s7 + $0x48] sm:$0xf]
  %v1650 = vld [vmem:[%s7 + $0x4c] sm:$0xf]
  %v1651 = vld [vmem:[%s7 + $0x50] sm:$0xf]
  %v1652 = vld [vmem:[%s7 + $0x54] sm:$0xf]
  %v1653 = vld [vmem:[%s7 + $0x58] sm:$0xf]
  %v1654 = vld [vmem:[%s7 + $0x5c] sm:$0xf]
  %v1655 = vld [vmem:[%s7 + $0x60] sm:$0xf]
  %v1656 = vld [vmem:[%s7 + $0x64] sm:$0xf]
  %v1657 = vld [vmem:[%s7 + $0x68] sm:$0xf]
  %v1658 = vld [vmem:[%s7 + $0x6c] sm:$0xf]
  %v1659 = vld [vmem:[%s7 + $0x70] sm:$0xf]
  %v1660 = vld [vmem:[%s7 + $0x74] sm:$0xf]
  %v1661 = vld [vmem:[%s7 + $0x78] sm:$0xf]
  %v1662 = vld [vmem:[%s7 + $0x7c] sm:$0xf]
  %v1663 = vpack.c.bf16 %v1623, %v1623
  %v1664 = vpack.c.bf16 %v1624, %v1624
  %s1665 = scalar_lea.vmem %s7, 128
  %v1666 = vld [vmem:[%s1665] sm:$0xf]
  %v1667 = vld [vmem:[%s1665 + $0x4] sm:$0xf]
  %v1668 = vld [vmem:[%s1665 + $0x8] sm:$0xf]
  %v1669 = vld [vmem:[%s1665 + $0xc] sm:$0xf]
  %v1670 = vld [vmem:[%s1665 + $0x10] sm:$0xf]
  %v1671 = vld [vmem:[%s1665 + $0x14] sm:$0xf]
  %v1672 = vld [vmem:[%s1665 + $0x18] sm:$0xf]
  %v1673 = vld [vmem:[%s1665 + $0x1c] sm:$0xf]
  %v1674 = vld [vmem:[%s1665 + $0x20] sm:$0xf]
  %v1675 = vld [vmem:[%s1665 + $0x24] sm:$0xf]
  %v1676 = vld [vmem:[%s1665 + $0x28] sm:$0xf]
  %v1677 = vld [vmem:[%s1665 + $0x2c] sm:$0xf]
  %v1678 = vld [vmem:[%s1665 + $0x30] sm:$0xf]
  %v1679 = vld [vmem:[%s1665 + $0x34] sm:$0xf]
  %v1680 = vld [vmem:[%s1665 + $0x38] sm:$0xf]
  %v1681 = vld [vmem:[%s1665 + $0x3c] sm:$0xf]
  %v1682 = vld [vmem:[%s1665 + $0x40] sm:$0xf]
  %v1683 = vld [vmem:[%s1665 + $0x44] sm:$0xf]
  %v1684 = vld [vmem:[%s1665 + $0x48] sm:$0xf]
  %v1685 = vld [vmem:[%s1665 + $0x4c] sm:$0xf]
  %v1686 = vld [vmem:[%s1665 + $0x50] sm:$0xf]
  %v1687 = vld [vmem:[%s1665 + $0x54] sm:$0xf]
  %v1688 = vld [vmem:[%s1665 + $0x58] sm:$0xf]
  %v1689 = vld [vmem:[%s1665 + $0x5c] sm:$0xf]
  %v1690 = vld [vmem:[%s1665 + $0x60] sm:$0xf]
  %v1691 = vld [vmem:[%s1665 + $0x64] sm:$0xf]
  %v1692 = vld [vmem:[%s1665 + $0x68] sm:$0xf]
  %v1693 = vld [vmem:[%s1665 + $0x6c] sm:$0xf]
  %v1694 = vld [vmem:[%s1665 + $0x70] sm:$0xf]
  %v1695 = vld [vmem:[%s1665 + $0x74] sm:$0xf]
  %v1696 = vld [vmem:[%s1665 + $0x78] sm:$0xf]
  %v1697 = vld [vmem:[%s1665 + $0x7c] sm:$0xf]
  %v1730 = vunpack.c.l.b16 %v1666
  %v1731 = vunpack.c.l.b16 %v1667
  %v1732 = vunpack.c.l.b16 %v1668
  %v1733 = vunpack.c.l.b16 %v1669
  %v1734 = vunpack.c.l.b16 %v1670
  %v1735 = vunpack.c.l.b16 %v1671
  %v1736 = vunpack.c.l.b16 %v1672
  %v1737 = vunpack.c.l.b16 %v1673
  %v1738 = vunpack.c.l.b16 %v1674
  %v1739 = vunpack.c.l.b16 %v1675
  %v1740 = vunpack.c.l.b16 %v1676
  %v1741 = vunpack.c.l.b16 %v1677
  %v1742 = vunpack.c.l.b16 %v1678
  %v1743 = vunpack.c.l.b16 %v1679
  %v1744 = vunpack.c.l.b16 %v1680
  %v1745 = vunpack.c.l.b16 %v1681
  %v1746 = vunpack.c.l.b16 %v1682
  %v1747 = vunpack.c.l.b16 %v1683
  %v1748 = vunpack.c.l.b16 %v1684
  %v1749 = vunpack.c.l.b16 %v1685
  %v1750 = vunpack.c.l.b16 %v1686
  %v1751 = vunpack.c.l.b16 %v1687
  %v1752 = vunpack.c.l.b16 %v1688
  %v1753 = vunpack.c.l.b16 %v1689
  %v1754 = vunpack.c.l.b16 %v1690
  %v1755 = vunpack.c.l.b16 %v1691
  %v1756 = vunpack.c.l.b16 %v1692
  %v1757 = vunpack.c.l.b16 %v1693
  %v1758 = vunpack.c.l.b16 %v1694
  %v1759 = vunpack.c.l.b16 %v1695
  %v1760 = vunpack.c.l.b16 %v1696
  %v1761 = vunpack.c.l.b16 %v1697
  %v1762 = vpack.c.b16 %v1731, %v1730
  %v1763 = vpack.c.b16 %v1733, %v1732
  %v1764 = vpack.c.b16 %v1735, %v1734
  %v1765 = vpack.c.b16 %v1737, %v1736
  %v1766 = vpack.c.b16 %v1739, %v1738
  %v1767 = vpack.c.b16 %v1741, %v1740
  %v1768 = vpack.c.b16 %v1743, %v1742
  %v1769 = vpack.c.b16 %v1745, %v1744
  %v1770 = vpack.c.b16 %v1747, %v1746
  %v1771 = vpack.c.b16 %v1749, %v1748
  %v1772 = vpack.c.b16 %v1751, %v1750
  %v1773 = vpack.c.b16 %v1753, %v1752
  %v1774 = vpack.c.b16 %v1755, %v1754
  %v1775 = vpack.c.b16 %v1757, %v1756
  %v1776 = vpack.c.b16 %v1759, %v1758
  %v1777 = vpack.c.b16 %v1761, %v1760
  %1794 = vmatpush.bf16.msra.mxu0 %v1769
  %1795 = vmatpush.bf16.msra.mxu0 %v1768
  %1796 = vmatpush.bf16.msra.mxu0 %v1767
  %1797 = vmatpush.bf16.msra.mxu0 %v1766
  %1798 = vmatpush.bf16.msra.mxu0 %v1765
  %1799 = vmatpush.bf16.msra.mxu0 %v1764
  %1800 = vmatpush.bf16.msra.mxu0 %v1763
  %1801 = vmatpush.bf16.msra.mxu0 %v1762
  %1802 = vmatmul.bf16.gmra.mxu0 %v1663
  %v1803 = vpop.f32.mrf.mxu0
  %v1804 = vadd.f32 0.0, %v1803
  %v1805 = vpop.f32.mrf.mxu0
  %1806 = vdwg.mxu0
  %1807 = vmatpush.bf16.msra.mxu0 %v1777
  %1808 = vmatpush.bf16.msra.mxu0 %v1776
  %1809 = vmatpush.bf16.msra.mxu0 %v1775
  %1810 = vmatpush.bf16.msra.mxu0 %v1774
  %1811 = vmatpush.bf16.msra.mxu0 %v1773
  %1812 = vmatpush.bf16.msra.mxu0 %v1772
  %1813 = vmatpush.bf16.msra.mxu0 %v1771
  %1814 = vmatpush.bf16.msra.mxu0 %v1770
  %1815 = vmatmul.bf16.gmra.mxu0 %v1664
  %v1816 = vpop.f32.mrf.mxu0
  %v1817 = vadd.f32 %v1804, %v1816
  %v1818 = vpop.f32.mrf.mxu0
  %1819 = vdwg.mxu0
  %v1852 = vunpack.c.l.b16 %v1631
  %v1853 = vunpack.c.l.b16 %v1632
  %v1854 = vunpack.c.l.b16 %v1633
  %v1855 = vunpack.c.l.b16 %v1634
  %v1856 = vunpack.c.l.b16 %v1635
  %v1857 = vunpack.c.l.b16 %v1636
  %v1858 = vunpack.c.l.b16 %v1637
  %v1859 = vunpack.c.l.b16 %v1638
  %v1860 = vunpack.c.l.b16 %v1639
  %v1861 = vunpack.c.l.b16 %v1640
  %v1862 = vunpack.c.l.b16 %v1641
  %v1863 = vunpack.c.l.b16 %v1642
  %v1864 = vunpack.c.l.b16 %v1643
  %v1865 = vunpack.c.l.b16 %v1644
  %v1866 = vunpack.c.l.b16 %v1645
  %v1867 = vunpack.c.l.b16 %v1646
  %v1868 = vunpack.c.l.b16 %v1647
  %v1869 = vunpack.c.l.b16 %v1648
  %v1870 = vunpack.c.l.b16 %v1649
  %v1871 = vunpack.c.l.b16 %v1650
  %v1872 = vunpack.c.l.b16 %v1651
  %v1873 = vunpack.c.l.b16 %v1652
  %v1874 = vunpack.c.l.b16 %v1653
  %v1875 = vunpack.c.l.b16 %v1654
  %v1876 = vunpack.c.l.b16 %v1655
  %v1877 = vunpack.c.l.b16 %v1656
  %v1878 = vunpack.c.l.b16 %v1657
  %v1879 = vunpack.c.l.b16 %v1658
  %v1880 = vunpack.c.l.b16 %v1659
  %v1881 = vunpack.c.l.b16 %v1660
  %v1882 = vunpack.c.l.b16 %v1661
  %v1883 = vunpack.c.l.b16 %v1662
  %v1884 = vpack.c.b16 %v1853, %v1852
  %v1885 = vpack.c.b16 %v1855, %v1854
  %v1886 = vpack.c.b16 %v1857, %v1856
  %v1887 = vpack.c.b16 %v1859, %v1858
  %v1888 = vpack.c.b16 %v1861, %v1860
  %v1889 = vpack.c.b16 %v1863, %v1862
  %v1890 = vpack.c.b16 %v1865, %v1864
  %v1891 = vpack.c.b16 %v1867, %v1866
  %v1892 = vpack.c.b16 %v1869, %v1868
  %v1893 = vpack.c.b16 %v1871, %v1870
  %v1894 = vpack.c.b16 %v1873, %v1872
  %v1895 = vpack.c.b16 %v1875, %v1874
  %v1896 = vpack.c.b16 %v1877, %v1876
  %v1897 = vpack.c.b16 %v1879, %v1878
  %v1898 = vpack.c.b16 %v1881, %v1880
  %v1899 = vpack.c.b16 %v1883, %v1882
  %1916 = vmatpush.bf16.msra.mxu0 %v1891
  %1917 = vmatpush.bf16.msra.mxu0 %v1890
  %1918 = vmatpush.bf16.msra.mxu0 %v1889
  %1919 = vmatpush.bf16.msra.mxu0 %v1888
  %1920 = vmatpush.bf16.msra.mxu0 %v1887
  %1921 = vmatpush.bf16.msra.mxu0 %v1886
  %1922 = vmatpush.bf16.msra.mxu0 %v1885
  %1923 = vmatpush.bf16.msra.mxu0 %v1884
  %1924 = vmatmul.bf16.gmra.mxu0 %v1629
  %v1925 = vpop.f32.mrf.mxu0
  %v1926 = vadd.f32 %v1817, %v1925
  %v1927 = vpop.f32.mrf.mxu0
  %1928 = vdwg.mxu0
  %1929 = vmatpush.bf16.msra.mxu0 %v1899
  %1930 = vmatpush.bf16.msra.mxu0 %v1898
  %1931 = vmatpush.bf16.msra.mxu0 %v1897
  %1932 = vmatpush.bf16.msra.mxu0 %v1896
  %1933 = vmatpush.bf16.msra.mxu0 %v1895
  %1934 = vmatpush.bf16.msra.mxu0 %v1894
  %1935 = vmatpush.bf16.msra.mxu0 %v1893
  %1936 = vmatpush.bf16.msra.mxu0 %v1892
  %1937 = vmatmul.bf16.gmra.mxu0 %v1630
  %v1938 = vpop.f32.mrf.mxu0
  %v1939 = vadd.f32 %v1926, %v1938
  %v1940 = vpop.f32.mrf.mxu0
  %1941 = vdwg.mxu0
  %v1942 = vpack.c.bf16 %v1625, %v1625
  %v1943 = vpack.c.bf16 %v1626, %v1626
  %s1944 = scalar_lea.vmem %s7, 256
  %v1945 = vld [vmem:[%s1944] sm:$0xf]
  %v1946 = vld [vmem:[%s1944 + $0x4] sm:$0xf]
  %v1947 = vld [vmem:[%s1944 + $0x8] sm:$0xf]
  %v1948 = vld [vmem:[%s1944 + $0xc] sm:$0xf]
  %v1949 = vld [vmem:[%s1944 + $0x10] sm:$0xf]
  %v1950 = vld [vmem:[%s1944 + $0x14] sm:$0xf]
  %v1951 = vld [vmem:[%s1944 + $0x18] sm:$0xf]
  %v1952 = vld [vmem:[%s1944 + $0x1c] sm:$0xf]
  %v1953 = vld [vmem:[%s1944 + $0x20] sm:$0xf]
  %v1954 = vld [vmem:[%s1944 + $0x24] sm:$0xf]
  %v1955 = vld [vmem:[%s1944 + $0x28] sm:$0xf]
  %v1956 = vld [vmem:[%s1944 + $0x2c] sm:$0xf]
  %v1957 = vld [vmem:[%s1944 + $0x30] sm:$0xf]
  %v1958 = vld [vmem:[%s1944 + $0x34] sm:$0xf]
  %v1959 = vld [vmem:[%s1944 + $0x38] sm:$0xf]
  %v1960 = vld [vmem:[%s1944 + $0x3c] sm:$0xf]
  %v1961 = vld [vmem:[%s1944 + $0x40] sm:$0xf]
  %v1962 = vld [vmem:[%s1944 + $0x44] sm:$0xf]
  %v1963 = vld [vmem:[%s1944 + $0x48] sm:$0xf]
  %v1964 = vld [vmem:[%s1944 + $0x4c] sm:$0xf]
  %v1965 = vld [vmem:[%s1944 + $0x50] sm:$0xf]
  %v1966 = vld [vmem:[%s1944 + $0x54] sm:$0xf]
  %v1967 = vld [vmem:[%s1944 + $0x58] sm:$0xf]
  %v1968 = vld [vmem:[%s1944 + $0x5c] sm:$0xf]
  %v1969 = vld [vmem:[%s1944 + $0x60] sm:$0xf]
  %v1970 = vld [vmem:[%s1944 + $0x64] sm:$0xf]
  %v1971 = vld [vmem:[%s1944 + $0x68] sm:$0xf]
  %v1972 = vld [vmem:[%s1944 + $0x6c] sm:$0xf]
  %v1973 = vld [vmem:[%s1944 + $0x70] sm:$0xf]
  %v1974 = vld [vmem:[%s1944 + $0x74] sm:$0xf]
  %v1975 = vld [vmem:[%s1944 + $0x78] sm:$0xf]
  %v1976 = vld [vmem:[%s1944 + $0x7c] sm:$0xf]
  %v2009 = vunpack.c.l.b16 %v1945
  %v2010 = vunpack.c.l.b16 %v1946
  %v2011 = vunpack.c.l.b16 %v1947
  %v2012 = vunpack.c.l.b16 %v1948
  %v2013 = vunpack.c.l.b16 %v1949
  %v2014 = vunpack.c.l.b16 %v1950
  %v2015 = vunpack.c.l.b16 %v1951
  %v2016 = vunpack.c.l.b16 %v1952
  %v2017 = vunpack.c.l.b16 %v1953
  %v2018 = vunpack.c.l.b16 %v1954
  %v2019 = vunpack.c.l.b16 %v1955
  %v2020 = vunpack.c.l.b16 %v1956
  %v2021 = vunpack.c.l.b16 %v1957
  %v2022 = vunpack.c.l.b16 %v1958
  %v2023 = vunpack.c.l.b16 %v1959
  %v2024 = vunpack.c.l.b16 %v1960
  %v2025 = vunpack.c.l.b16 %v1961
  %v2026 = vunpack.c.l.b16 %v1962
  %v2027 = vunpack.c.l.b16 %v1963
  %v2028 = vunpack.c.l.b16 %v1964
  %v2029 = vunpack.c.l.b16 %v1965
  %v2030 = vunpack.c.l.b16 %v1966
  %v2031 = vunpack.c.l.b16 %v1967
  %v2032 = vunpack.c.l.b16 %v1968
  %v2033 = vunpack.c.l.b16 %v1969
  %v2034 = vunpack.c.l.b16 %v1970
  %v2035 = vunpack.c.l.b16 %v1971
  %v2036 = vunpack.c.l.b16 %v1972
  %v2037 = vunpack.c.l.b16 %v1973
  %v2038 = vunpack.c.l.b16 %v1974
  %v2039 = vunpack.c.l.b16 %v1975
  %v2040 = vunpack.c.l.b16 %v1976
  %v2041 = vpack.c.b16 %v2010, %v2009
  %v2042 = vpack.c.b16 %v2012, %v2011
  %v2043 = vpack.c.b16 %v2014, %v2013
  %v2044 = vpack.c.b16 %v2016, %v2015
  %v2045 = vpack.c.b16 %v2018, %v2017
  %v2046 = vpack.c.b16 %v2020, %v2019
  %v2047 = vpack.c.b16 %v2022, %v2021
  %v2048 = vpack.c.b16 %v2024, %v2023
  %v2049 = vpack.c.b16 %v2026, %v2025
  %v2050 = vpack.c.b16 %v2028, %v2027
  %v2051 = vpack.c.b16 %v2030, %v2029
  %v2052 = vpack.c.b16 %v2032, %v2031
  %v2053 = vpack.c.b16 %v2034, %v2033
  %v2054 = vpack.c.b16 %v2036, %v2035
  %v2055 = vpack.c.b16 %v2038, %v2037
  %v2056 = vpack.c.b16 %v2040, %v2039
  %2073 = vmatpush.bf16.msra.mxu0 %v2048
  %2074 = vmatpush.bf16.msra.mxu0 %v2047
  %2075 = vmatpush.bf16.msra.mxu0 %v2046
  %2076 = vmatpush.bf16.msra.mxu0 %v2045
  %2077 = vmatpush.bf16.msra.mxu0 %v2044
  %2078 = vmatpush.bf16.msra.mxu0 %v2043
  %2079 = vmatpush.bf16.msra.mxu0 %v2042
  %2080 = vmatpush.bf16.msra.mxu0 %v2041
  %2081 = vmatmul.bf16.gmra.mxu0 %v1942
  %v2082 = vpop.f32.mrf.mxu0
  %v2083 = vadd.f32 0.0, %v2082
  %v2084 = vpop.f32.mrf.mxu0
  %2085 = vdwg.mxu0
  %2086 = vmatpush.bf16.msra.mxu0 %v2056
  %2087 = vmatpush.bf16.msra.mxu0 %v2055
  %2088 = vmatpush.bf16.msra.mxu0 %v2054
  %2089 = vmatpush.bf16.msra.mxu0 %v2053
  %2090 = vmatpush.bf16.msra.mxu0 %v2052
  %2091 = vmatpush.bf16.msra.mxu0 %v2051
  %2092 = vmatpush.bf16.msra.mxu0 %v2050
  %2093 = vmatpush.bf16.msra.mxu0 %v2049
  %2094 = vmatmul.bf16.gmra.mxu0 %v1943
  %v2095 = vpop.f32.mrf.mxu0
  %v2096 = vadd.f32 %v2083, %v2095
  %v2097 = vpop.f32.mrf.mxu0
  %2098 = vdwg.mxu0
  %v2099 = vadd.f32 %v1939, %v2096
  %v2100 = vpack.c.bf16 %v1627, %v1627
  %v2101 = vpack.c.bf16 %v1628, %v1628
  %s2102 = scalar_lea.vmem %s7, 384
  %v2103 = vld [vmem:[%s2102] sm:$0xf]
  %v2104 = vld [vmem:[%s2102 + $0x4] sm:$0xf]
  %v2105 = vld [vmem:[%s2102 + $0x8] sm:$0xf]
  %v2106 = vld [vmem:[%s2102 + $0xc] sm:$0xf]
  %v2107 = vld [vmem:[%s2102 + $0x10] sm:$0xf]
  %v2108 = vld [vmem:[%s2102 + $0x14] sm:$0xf]
  %v2109 = vld [vmem:[%s2102 + $0x18] sm:$0xf]
  %v2110 = vld [vmem:[%s2102 + $0x1c] sm:$0xf]
  %v2111 = vld [vmem:[%s2102 + $0x20] sm:$0xf]
  %v2112 = vld [vmem:[%s2102 + $0x24] sm:$0xf]
  %v2113 = vld [vmem:[%s2102 + $0x28] sm:$0xf]
  %v2114 = vld [vmem:[%s2102 + $0x2c] sm:$0xf]
  %v2115 = vld [vmem:[%s2102 + $0x30] sm:$0xf]
  %v2116 = vld [vmem:[%s2102 + $0x34] sm:$0xf]
  %v2117 = vld [vmem:[%s2102 + $0x38] sm:$0xf]
  %v2118 = vld [vmem:[%s2102 + $0x3c] sm:$0xf]
  %v2119 = vld [vmem:[%s2102 + $0x40] sm:$0xf]
  %v2120 = vld [vmem:[%s2102 + $0x44] sm:$0xf]
  %v2121 = vld [vmem:[%s2102 + $0x48] sm:$0xf]
  %v2122 = vld [vmem:[%s2102 + $0x4c] sm:$0xf]
  %v2123 = vld [vmem:[%s2102 + $0x50] sm:$0xf]
  %v2124 = vld [vmem:[%s2102 + $0x54] sm:$0xf]
  %v2125 = vld [vmem:[%s2102 + $0x58] sm:$0xf]
  %v2126 = vld [vmem:[%s2102 + $0x5c] sm:$0xf]
  %v2127 = vld [vmem:[%s2102 + $0x60] sm:$0xf]
  %v2128 = vld [vmem:[%s2102 + $0x64] sm:$0xf]
  %v2129 = vld [vmem:[%s2102 + $0x68] sm:$0xf]
  %v2130 = vld [vmem:[%s2102 + $0x6c] sm:$0xf]
  %v2131 = vld [vmem:[%s2102 + $0x70] sm:$0xf]
  %v2132 = vld [vmem:[%s2102 + $0x74] sm:$0xf]
  %v2133 = vld [vmem:[%s2102 + $0x78] sm:$0xf]
  %v2134 = vld [vmem:[%s2102 + $0x7c] sm:$0xf]
  %v2167 = vunpack.c.l.b16 %v2103
  %v2168 = vunpack.c.l.b16 %v2104
  %v2169 = vunpack.c.l.b16 %v2105
  %v2170 = vunpack.c.l.b16 %v2106
  %v2171 = vunpack.c.l.b16 %v2107
  %v2172 = vunpack.c.l.b16 %v2108
  %v2173 = vunpack.c.l.b16 %v2109
  %v2174 = vunpack.c.l.b16 %v2110
  %v2175 = vunpack.c.l.b16 %v2111
  %v2176 = vunpack.c.l.b16 %v2112
  %v2177 = vunpack.c.l.b16 %v2113
  %v2178 = vunpack.c.l.b16 %v2114
  %v2179 = vunpack.c.l.b16 %v2115
  %v2180 = vunpack.c.l.b16 %v2116
  %v2181 = vunpack.c.l.b16 %v2117
  %v2182 = vunpack.c.l.b16 %v2118
  %v2183 = vunpack.c.l.b16 %v2119
  %v2184 = vunpack.c.l.b16 %v2120
  %v2185 = vunpack.c.l.b16 %v2121
  %v2186 = vunpack.c.l.b16 %v2122
  %v2187 = vunpack.c.l.b16 %v2123
  %v2188 = vunpack.c.l.b16 %v2124
  %v2189 = vunpack.c.l.b16 %v2125
  %v2190 = vunpack.c.l.b16 %v2126
  %v2191 = vunpack.c.l.b16 %v2127
  %v2192 = vunpack.c.l.b16 %v2128
  %v2193 = vunpack.c.l.b16 %v2129
  %v2194 = vunpack.c.l.b16 %v2130
  %v2195 = vunpack.c.l.b16 %v2131
  %v2196 = vunpack.c.l.b16 %v2132
  %v2197 = vunpack.c.l.b16 %v2133
  %v2198 = vunpack.c.l.b16 %v2134
  %v2199 = vpack.c.b16 %v2168, %v2167
  %v2200 = vpack.c.b16 %v2170, %v2169
  %v2201 = vpack.c.b16 %v2172, %v2171
  %v2202 = vpack.c.b16 %v2174, %v2173
  %v2203 = vpack.c.b16 %v2176, %v2175
  %v2204 = vpack.c.b16 %v2178, %v2177
  %v2205 = vpack.c.b16 %v2180, %v2179
  %v2206 = vpack.c.b16 %v2182, %v2181
  %v2207 = vpack.c.b16 %v2184, %v2183
  %v2208 = vpack.c.b16 %v2186, %v2185
  %v2209 = vpack.c.b16 %v2188, %v2187
  %v2210 = vpack.c.b16 %v2190, %v2189
  %v2211 = vpack.c.b16 %v2192, %v2191
  %v2212 = vpack.c.b16 %v2194, %v2193
  %v2213 = vpack.c.b16 %v2196, %v2195
  %v2214 = vpack.c.b16 %v2198, %v2197
  %2231 = vmatpush.bf16.msra.mxu0 %v2206
  %2232 = vmatpush.bf16.msra.mxu0 %v2205
  %2233 = vmatpush.bf16.msra.mxu0 %v2204
  %2234 = vmatpush.bf16.msra.mxu0 %v2203
  %2235 = vmatpush.bf16.msra.mxu0 %v2202
  %2236 = vmatpush.bf16.msra.mxu0 %v2201
  %2237 = vmatpush.bf16.msra.mxu0 %v2200
  %2238 = vmatpush.bf16.msra.mxu0 %v2199
  %2239 = vmatmul.bf16.gmra.mxu0 %v2100
  %v2240 = vpop.f32.mrf.mxu0
  %v2241 = vadd.f32 0.0, %v2240
  %v2242 = vpop.f32.mrf.mxu0
  %2243 = vdwg.mxu0
  %2244 = vmatpush.bf16.msra.mxu0 %v2214
  %2245 = vmatpush.bf16.msra.mxu0 %v2213
  %2246 = vmatpush.bf16.msra.mxu0 %v2212
  %2247 = vmatpush.bf16.msra.mxu0 %v2211
  %2248 = vmatpush.bf16.msra.mxu0 %v2210
  %2249 = vmatpush.bf16.msra.mxu0 %v2209
  %2250 = vmatpush.bf16.msra.mxu0 %v2208
  %2251 = vmatpush.bf16.msra.mxu0 %v2207
  %2252 = vmatmul.bf16.gmra.mxu0 %v2101
  %v2253 = vpop.f32.mrf.mxu0
  %v2254 = vadd.f32 %v2241, %v2253
  %v2255 = vpop.f32.mrf.mxu0
  %2256 = vdwg.mxu0
  %v2257 = vadd.f32 %v2099, %v2254
  %v2258 = vld [vmem:[%s8] sm:$0x1]
  %v2260 = vperm.slane %v2258, 0
  %v2262 = vadd.f32 %v2257, %v2260
  %v2263 = vmax.f32 %v2262, 0.0
  %v2264 = vpack.c.bf16 %v2263, %v2263
  %v2265 = vld [vmem:[%s9] sm:$0xf]
  %v2266 = vld [vmem:[%s9 + $0x4] sm:$0xf]
  %v2267 = vld [vmem:[%s9 + $0x8] sm:$0xf]
  %v2268 = vld [vmem:[%s9 + $0xc] sm:$0xf]
  %v2269 = vld [vmem:[%s9 + $0x10] sm:$0xf]
  %v2270 = vld [vmem:[%s9 + $0x14] sm:$0xf]
  %v2271 = vld [vmem:[%s9 + $0x18] sm:$0xf]
  %v2272 = vld [vmem:[%s9 + $0x1c] sm:$0xf]
  %v2273 = vld [vmem:[%s9 + $0x20] sm:$0xf]
  %v2274 = vld [vmem:[%s9 + $0x24] sm:$0xf]
  %v2275 = vld [vmem:[%s9 + $0x28] sm:$0xf]
  %v2276 = vld [vmem:[%s9 + $0x2c] sm:$0xf]
  %v2277 = vld [vmem:[%s9 + $0x30] sm:$0xf]
  %v2278 = vld [vmem:[%s9 + $0x34] sm:$0xf]
  %v2279 = vld [vmem:[%s9 + $0x38] sm:$0xf]
  %v2280 = vld [vmem:[%s9 + $0x3c] sm:$0xf]
  %v2281 = vld [vmem:[%s10] sm:$0x1]
  %v2283 = vperm.slane %v2281, 0
  %v2301 = vunpack.c.l.b16 %v2265
  %v2302 = vunpack.c.l.b16 %v2266
  %v2303 = vunpack.c.l.b16 %v2267
  %v2304 = vunpack.c.l.b16 %v2268
  %v2305 = vunpack.c.l.b16 %v2269
  %v2306 = vunpack.c.l.b16 %v2270
  %v2307 = vunpack.c.l.b16 %v2271
  %v2308 = vunpack.c.l.b16 %v2272
  %v2309 = vunpack.c.l.b16 %v2273
  %v2310 = vunpack.c.l.b16 %v2274
  %v2311 = vunpack.c.l.b16 %v2275
  %v2312 = vunpack.c.l.b16 %v2276
  %v2313 = vunpack.c.l.b16 %v2277
  %v2314 = vunpack.c.l.b16 %v2278
  %v2315 = vunpack.c.l.b16 %v2279
  %v2316 = vunpack.c.l.b16 %v2280
  %v2317 = vpack.c.b16 %v2302, %v2301
  %v2318 = vpack.c.b16 %v2304, %v2303
  %v2319 = vpack.c.b16 %v2306, %v2305
  %v2320 = vpack.c.b16 %v2308, %v2307
  %v2321 = vpack.c.b16 %v2310, %v2309
  %v2322 = vpack.c.b16 %v2312, %v2311
  %v2323 = vpack.c.b16 %v2314, %v2313
  %v2324 = vpack.c.b16 %v2316, %v2315
  %2333 = vmatpush.bf16.msra.mxu0 %v2324
  %2334 = vmatpush.bf16.msra.mxu0 %v2323
  %2335 = vmatpush.bf16.msra.mxu0 %v2322
  %2336 = vmatpush.bf16.msra.mxu0 %v2321
  %2337 = vmatpush.bf16.msra.mxu0 %v2320
  %2338 = vmatpush.bf16.msra.mxu0 %v2319
  %2339 = vmatpush.bf16.msra.mxu0 %v2318
  %2340 = vmatpush.bf16.msra.mxu0 %v2317
  %2341 = vmatmul.bf16.gmra.mxu0 %v2264
  %v2342 = vpop.f32.mrf.mxu0
  %v2343 = vadd.f32 %v2283, %v2342
  %v2344 = vpop.f32.mrf.mxu0
  %2345 = vdwg.mxu0
  %2346 = vst [vmem:[%s11] sm:$0xff] %v2343
  // Predicated region
  $region46: #{keystroke_cnn_forward.1} parent=0 // pred_check
    _
  $region47: #{keystroke_cnn_forward.1} parent=0 // pred_check_branch
    %2348 = sbr.rel (0) target = $region49
  $region48: #{keystroke_cnn_forward.1} parent=0 // pred_region
    _
  $region49: #{keystroke_cnn_forward.1} parent=0 // pred_fallthru
    _
  // Predicated region
  $region50: #{keystroke_cnn_forward.1} parent=0 // pred_check
    _
  $region51: #{keystroke_cnn_forward.1} parent=0 // pred_check_branch
    %2350 = sbr.rel (0) target = $region53
  $region52: #{keystroke_cnn_forward.1} parent=0 // pred_region
    _
  $region53: #{keystroke_cnn_forward.1} parent=0 // pred_fallthru
    _

</llo_original>
